<compile_context>
chip_gen: v5e
topology: v5e:2x2
jax: 0.10.0
libtpu: 0.0.40
codegen_flags: <defaults>
</compile_context>

<pallas_src>
import functools

import jax
import jax.numpy as jnp
from jax.experimental import pallas as pl
from jax.experimental.pallas import tpu as pltpu

# ----- small synthetic config (consistent with a tiny BERT) -----
B, S, H = 2, 8, 32          # batch, seq, hidden
NH, HD = 4, 8               # num heads, head dim (NH * HD == H)
INTER = 64                  # FFN intermediate size
LAYERS = 2
VOCAB = 100
MAX_POS = 16
EPS = 1e-12                 # BERT LayerNorm eps


def _layernorm(x, g, b):
    mu = jnp.mean(x, axis=-1, keepdims=True)
    var = jnp.mean((x - mu) ** 2, axis=-1, keepdims=True)
    return (x - mu) * jax.lax.rsqrt(var + EPS) * g + b


# ---------------- fused encoder kernel ----------------

def bert_encoder_kernel(x_ref, bias_ref, eg_ref, eb_ref,
                        wqkv_ref, bqkv_ref, wo_ref, bo_ref,
                        ln1g_ref, ln1b_ref, w1_ref, b1_ref,
                        w2_ref, b2_ref, ln2g_ref, ln2b_ref,
                        o_ref):
    # x_ref: (B*S, H) summed embeddings (f32)
    # bias_ref: (B*NH, 1, S) additive attention mask (-1e4 on pads)
    x = _layernorm(x_ref[...], eg_ref[...], eb_ref[...])        # (B*S, H) f32
    bias = bias_ref[...]                                         # (B*NH, 1, S)
    scale = 1.0 / (HD ** 0.5)

    def to_heads(t):
        # (B*S, H) -> (B*NH, S, HD) with only static slices (no transposes).
        return jnp.stack(
            [t[b * S:(b + 1) * S, h * HD:(h + 1) * HD]
             for b in range(B) for h in range(NH)],
            axis=0)

    for l in range(LAYERS):                 # static unroll (LAYERS = 2)
        # --- fused QKV projection (bf16 weights, f32 accumulate) ---
        qkv = jnp.dot(x.astype(jnp.bfloat16), wqkv_ref[l],
                      preferred_element_type=jnp.float32) + bqkv_ref[l]  # (B*S, 3H)
        q = qkv[:, 0 * H:1 * H]
        k = qkv[:, 1 * H:2 * H]
        v = qkv[:, 2 * H:3 * H]

        qh, kh, vh = to_heads(q), to_heads(k), to_heads(v)       # (B*NH, S, HD)

        # --- head-batched attention ---
        s = jnp.einsum('bqd,bkd->bqk', qh, kh,
                       preferred_element_type=jnp.float32) * scale + bias
        s = s - jnp.max(s, axis=-1, keepdims=True)
        p = jnp.exp(s)
        p = p * pl.reciprocal(jnp.sum(p, axis=-1, keepdims=True), approx=True)
        ctx_h = jnp.einsum('bqk,bkd->bqd', p, vh,
                           preferred_element_type=jnp.float32)   # (B*NH, S, HD)

        # back to (B*S, H): row b*S+s, lanes h*HD+d
        ctx = jnp.concatenate(
            [jnp.concatenate([ctx_h[b * NH + h] for h in range(NH)], axis=-1)
             for b in range(B)], axis=0)                         # (B*S, H)

        # --- attention output projection + residual LayerNorm ---
        attn = jnp.dot(ctx.astype(jnp.bfloat16), wo_ref[l],
                       preferred_element_type=jnp.float32) + bo_ref[l]
        h1 = _layernorm(x + attn, ln1g_ref[l], ln1b_ref[l])

        # --- FFN (tanh GELU) + residual LayerNorm ---
        ff = jnp.dot(h1.astype(jnp.bfloat16), w1_ref[l],
                     preferred_element_type=jnp.float32) + b1_ref[l]
        ff = jax.nn.gelu(ff, approximate=True)
        ff = jnp.dot(ff.astype(jnp.bfloat16), w2_ref[l],
                     preferred_element_type=jnp.float32) + b2_ref[l]
        x = _layernorm(h1 + ff, ln2g_ref[l], ln2b_ref[l])

    # CLS rows only (row b*S for every batch element)
    o_ref[...] = jnp.concatenate([x[b * S:b * S + 1, :] for b in range(B)], axis=0)


# ---------------- forward wrapper ----------------

@functools.partial(jax.jit, static_argnames=("is_query",))
def bert_dot_dualfusion_forward(params, input_ids, attention_mask, is_query):
    # glue: embedding gather + sum (word + position + token_type==0)
    word = jnp.take(params["word_emb"], input_ids, axis=0)           # (B, S, H)
    pos = params["pos_emb"][:S][None, :, :]
    typ = params["type_emb"][0][None, None, :]
    x = (word + pos + typ).reshape(B * S, H).astype(jnp.float32)

    # additive mask, replicated per head -> (B*NH, 1, S)
    mask_bias = (1.0 - attention_mask.astype(jnp.float32)) * -10000.0  # (B, S)
    mask_bias = jnp.repeat(mask_bias, NH, axis=0)[:, None, :]

    args = [x, mask_bias, params["emb_ln_g"], params["emb_ln_b"],
            params["wqkv"], params["bqkv"], params["wo"], params["bo"],
            params["ln1_g"], params["ln1_b"], params["w1"], params["b1"],
            params["w2"], params["b2"], params["ln2_g"], params["ln2_b"]]

    vmem_spec = pl.BlockSpec(memory_space=pltpu.MemorySpace.VMEM)
    out = pl.pallas_call(
        bert_encoder_kernel,
        out_shape=jax.ShapeDtypeStruct((B, H), jnp.float32),
        in_specs=[vmem_spec] * len(args),
        out_specs=vmem_spec,
        compiler_params=pltpu.CompilerParams(vmem_limit_bytes=32 * 1024 * 1024),
    )(*args)

    # is_query chooses query_emb vs body_emb, which are identical.
    del is_query
    return out


# ---------------- pure-JAX reference (same math) ----------------

def reference_forward(params, input_ids, attention_mask):
    word = jnp.take(params["word_emb"], input_ids, axis=0)
    x = (word + params["pos_emb"][:S][None, :, :]
         + params["type_emb"][0][None, None, :]).reshape(B * S, H)
    x = _layernorm(x, params["emb_ln_g"], params["emb_ln_b"])
    bias = (1.0 - attention_mask.astype(jnp.float32)) * -10000.0      # (B, S)
    scale = 1.0 / (HD ** 0.5)
    for l in range(LAYERS):
        qkv = jnp.dot(x.astype(jnp.bfloat16), params["wqkv"][l],
                      preferred_element_type=jnp.float32) + params["bqkv"][l]
        q = qkv[:, :H].reshape(B, S, NH, HD)
        k = qkv[:, H:2 * H].reshape(B, S, NH, HD)
        v = qkv[:, 2 * H:].reshape(B, S, NH, HD)
        s = jnp.einsum('bqhd,bkhd->bhqk', q, k) * scale + bias[:, None, None, :]
        p = jax.nn.softmax(s, axis=-1)
        ctx = jnp.einsum('bhqk,bkhd->bqhd', p, v).reshape(B * S, H)
        attn = jnp.dot(ctx.astype(jnp.bfloat16), params["wo"][l],
                       preferred_element_type=jnp.float32) + params["bo"][l]
        h1 = _layernorm(x + attn, params["ln1_g"][l], params["ln1_b"][l])
        ff = jnp.dot(h1.astype(jnp.bfloat16), params["w1"][l],
                     preferred_element_type=jnp.float32) + params["b1"][l]
        ff = jax.nn.gelu(ff, approximate=True)
        ff = jnp.dot(ff.astype(jnp.bfloat16), params["w2"][l],
                     preferred_element_type=jnp.float32) + params["b2"][l]
        x = _layernorm(h1 + ff, params["ln2_g"][l], params["ln2_b"][l])
    return x.reshape(B, S, H)[:, 0, :]


# ---------------- deterministic parameter init ----------------

def init_params(key):
    std = 0.02
    keys = jax.random.split(key, 3 + LAYERS * 4)
    ki = iter(keys)

    def rnd(shape):
        return jax.random.normal(next(ki), shape, jnp.float32) * std

    params = {
        "word_emb": rnd((VOCAB, H)),
        "pos_emb": rnd((MAX_POS, H)),
        "type_emb": rnd((2, H)),
        "emb_ln_g": jnp.ones((1, H), jnp.float32),
        "emb_ln_b": jnp.zeros((1, H), jnp.float32),
    }

    wqkv, wo, w1, w2 = [], [], [], []
    for _ in range(LAYERS):
        wqkv.append(rnd((H, 3 * H)))
        wo.append(rnd((H, H)))
        w1.append(rnd((H, INTER)))
        w2.append(rnd((INTER, H)))

    params.update({
        # matmul weights in bf16 (MXU-friendly on v6e/v7x), biases/LN in f32
        "wqkv": jnp.stack(wqkv).astype(jnp.bfloat16),       # (L, H, 3H)
        "bqkv": jnp.zeros((LAYERS, 1, 3 * H), jnp.float32),
        "wo": jnp.stack(wo).astype(jnp.bfloat16),            # (L, H, H)
        "bo": jnp.zeros((LAYERS, 1, H), jnp.float32),
        "ln1_g": jnp.ones((LAYERS, 1, H), jnp.float32),
        "ln1_b": jnp.zeros((LAYERS, 1, H), jnp.float32),
        "w1": jnp.stack(w1).astype(jnp.bfloat16),             # (L, H, INTER)
        "b1": jnp.zeros((LAYERS, 1, INTER), jnp.float32),
        "w2": jnp.stack(w2).astype(jnp.bfloat16),             # (L, INTER, H)
        "b2": jnp.zeros((LAYERS, 1, H), jnp.float32),
        "ln2_g": jnp.ones((LAYERS, 1, H), jnp.float32),
        "ln2_b": jnp.zeros((LAYERS, 1, H), jnp.float32),
    })
    return params


if __name__ == "__main__":
    key = jax.random.PRNGKey(0)
    pkey, ikey = jax.random.split(key)
    params = init_params(pkey)

    input_ids = jax.random.randint(ikey, (B, S), 0, VOCAB, dtype=jnp.int32)
    attention_mask = jnp.ones((B, S), jnp.int32).at[1, 6:].set(0)  # pad tail of item 1

    out_q = bert_dot_dualfusion_forward(params, input_ids, attention_mask, is_query=True)
    out_d = bert_dot_dualfusion_forward(params, input_ids, attention_mask, is_query=False)
    jax.block_until_ready(out_q)
    jax.block_until_ready(out_d)
    assert out_q.shape == (B, H) and out_d.shape == (B, H)

    ref = reference_forward(params, input_ids, attention_mask)
    err = float(jnp.max(jnp.abs(out_q - ref)))
    assert err < 5e-2, f"kernel mismatch vs reference: max abs err {err}"

    print("KERNEL_OK")
</pallas_src>

<mosaic_0001>
module attributes {stable_mosaic.version = 11 : i64} {
  func.func @bert_encoder_kernel(%arg0: memref<16x32xf32, #tpu.memory_space<vmem>>, %arg1: memref<8x1x8xf32, #tpu.memory_space<vmem>>, %arg2: memref<1x32xf32, #tpu.memory_space<vmem>>, %arg3: memref<1x32xf32, #tpu.memory_space<vmem>>, %arg4: memref<2x32x96xbf16, #tpu.memory_space<vmem>>, %arg5: memref<2x1x96xf32, #tpu.memory_space<vmem>>, %arg6: memref<2x32x32xbf16, #tpu.memory_space<vmem>>, %arg7: memref<2x1x32xf32, #tpu.memory_space<vmem>>, %arg8: memref<2x1x32xf32, #tpu.memory_space<vmem>>, %arg9: memref<2x1x32xf32, #tpu.memory_space<vmem>>, %arg10: memref<2x32x64xbf16, #tpu.memory_space<vmem>>, %arg11: memref<2x1x64xf32, #tpu.memory_space<vmem>>, %arg12: memref<2x64x32xbf16, #tpu.memory_space<vmem>>, %arg13: memref<2x1x32xf32, #tpu.memory_space<vmem>>, %arg14: memref<2x1x32xf32, #tpu.memory_space<vmem>>, %arg15: memref<2x1x32xf32, #tpu.memory_space<vmem>>, %arg16: memref<2x32xf32, #tpu.memory_space<vmem>>) attributes {dimension_semantics = [], scalar_prefetch = 0 : i64, scratch_operands = 0 : i64, tpu.core_type = #tpu.core_type<tc>} {
    %c0 = arith.constant 0 : index
    %c0_0 = arith.constant 0 : index
    %0 = vector.load %arg0[%c0, %c0_0] : memref<16x32xf32, #tpu.memory_space<vmem>>, vector<16x32xf32>
    %c0_1 = arith.constant 0 : index
    %c0_2 = arith.constant 0 : index
    %1 = vector.load %arg2[%c0_1, %c0_2] : memref<1x32xf32, #tpu.memory_space<vmem>>, vector<1x32xf32>
    %c0_3 = arith.constant 0 : index
    %c0_4 = arith.constant 0 : index
    %2 = vector.load %arg3[%c0_3, %c0_4] : memref<1x32xf32, #tpu.memory_space<vmem>>, vector<1x32xf32>
    %cst = arith.constant dense<0.000000e+00> : vector<16xf32>
    %3 = vector.multi_reduction <add>, %0, %cst [1] : vector<16x32xf32> to vector<16xf32>
    %4 = vector.shape_cast %3 : vector<16xf32> to vector<16x1xf32>
    %cst_5 = arith.constant 3.200000e+01 : f32
    %5 = vector.broadcast %cst_5 : f32 to vector<16x1xf32>
    %6 = arith.divf %4, %5 : vector<16x1xf32>
    %7 = vector.broadcast %6 : vector<16x1xf32> to vector<16x32xf32>
    %8 = arith.subf %0, %7 : vector<16x32xf32>
    %9 = arith.mulf %8, %8 : vector<16x32xf32>
    %cst_6 = arith.constant dense<0.000000e+00> : vector<16xf32>
    %10 = vector.multi_reduction <add>, %9, %cst_6 [1] : vector<16x32xf32> to vector<16xf32>
    %11 = vector.shape_cast %10 : vector<16xf32> to vector<16x1xf32>
    %cst_7 = arith.constant 3.200000e+01 : f32
    %12 = vector.broadcast %cst_7 : f32 to vector<16x1xf32>
    %13 = arith.divf %11, %12 : vector<16x1xf32>
    %14 = vector.broadcast %6 : vector<16x1xf32> to vector<16x32xf32>
    %15 = arith.subf %0, %14 : vector<16x32xf32>
    %cst_8 = arith.constant 9.99999996E-13 : f32
    %16 = vector.broadcast %cst_8 : f32 to vector<16x1xf32>
    %17 = arith.addf %13, %16 : vector<16x1xf32>
    %18 = math.rsqrt %17 : vector<16x1xf32>
    %19 = vector.broadcast %18 : vector<16x1xf32> to vector<16x32xf32>
    %20 = arith.mulf %15, %19 : vector<16x32xf32>
    %21 = vector.broadcast %1 : vector<1x32xf32> to vector<16x32xf32>
    %22 = arith.mulf %20, %21 : vector<16x32xf32>
    %23 = vector.broadcast %2 : vector<1x32xf32> to vector<16x32xf32>
    %24 = arith.addf %22, %23 : vector<16x32xf32>
    %c0_9 = arith.constant 0 : index
    %c0_10 = arith.constant 0 : index
    %c0_11 = arith.constant 0 : index
    %25 = vector.load %arg1[%c0_9, %c0_10, %c0_11] : memref<8x1x8xf32, #tpu.memory_space<vmem>>, vector<8x1x8xf32>
    %26 = arith.truncf %24 : vector<16x32xf32> to vector<16x32xbf16>
    %c0_12 = arith.constant 0 : index
    %c0_13 = arith.constant 0 : index
    %c0_14 = arith.constant 0 : index
    %27 = vector.load %arg4[%c0_12, %c0_13, %c0_14] : memref<2x32x96xbf16, #tpu.memory_space<vmem>>, vector<1x32x96xbf16>
    %28 = vector.shape_cast %27 : vector<1x32x96xbf16> to vector<32x96xbf16>
    %cst_15 = arith.constant dense<0.000000e+00> : vector<16x96xf32>
    %29 = tpu.matmul %26, %28, %cst_15 {dimension_numbers = #tpu.dot_dimension_numbers<[1], [0], [0], [1], [0, 0, 1, 1], [], []>} : vector<16x32xbf16>, vector<32x96xbf16>, vector<16x96xf32> -> vector<16x96xf32>
    %c0_16 = arith.constant 0 : index
    %c0_17 = arith.constant 0 : index
    %c0_18 = arith.constant 0 : index
    %30 = vector.load %arg5[%c0_16, %c0_17, %c0_18] : memref<2x1x96xf32, #tpu.memory_space<vmem>>, vector<1x1x96xf32>
    %31 = vector.shape_cast %30 : vector<1x1x96xf32> to vector<1x96xf32>
    %32 = vector.broadcast %31 : vector<1x96xf32> to vector<16x96xf32>
    %33 = arith.addf %29, %32 : vector<16x96xf32>
    %34 = vector.extract_strided_slice %33 {offsets = [0, 0], sizes = [16, 32], strides = [1, 1]} : vector<16x96xf32> to vector<16x32xf32>
    %35 = vector.extract_strided_slice %33 {offsets = [0, 32], sizes = [16, 32], strides = [1, 1]} : vector<16x96xf32> to vector<16x32xf32>
    %36 = vector.extract_strided_slice %33 {offsets = [0, 64], sizes = [16, 32], strides = [1, 1]} : vector<16x96xf32> to vector<16x32xf32>
    %37 = vector.extract_strided_slice %34 {offsets = [0, 0], sizes = [8, 8], strides = [1, 1]} : vector<16x32xf32> to vector<8x8xf32>
    %38 = vector.extract_strided_slice %34 {offsets = [0, 8], sizes = [8, 8], strides = [1, 1]} : vector<16x32xf32> to vector<8x8xf32>
    %39 = vector.extract_strided_slice %34 {offsets = [0, 16], sizes = [8, 8], strides = [1, 1]} : vector<16x32xf32> to vector<8x8xf32>
    %40 = vector.extract_strided_slice %34 {offsets = [0, 24], sizes = [8, 8], strides = [1, 1]} : vector<16x32xf32> to vector<8x8xf32>
    %41 = vector.extract_strided_slice %34 {offsets = [8, 0], sizes = [8, 8], strides = [1, 1]} : vector<16x32xf32> to vector<8x8xf32>
    %42 = vector.extract_strided_slice %34 {offsets = [8, 8], sizes = [8, 8], strides = [1, 1]} : vector<16x32xf32> to vector<8x8xf32>
    %43 = vector.extract_strided_slice %34 {offsets = [8, 16], sizes = [8, 8], strides = [1, 1]} : vector<16x32xf32> to vector<8x8xf32>
    %44 = vector.extract_strided_slice %34 {offsets = [8, 24], sizes = [8, 8], strides = [1, 1]} : vector<16x32xf32> to vector<8x8xf32>
    %45 = vector.shape_cast %37 : vector<8x8xf32> to vector<1x8x8xf32>
    %46 = vector.shape_cast %38 : vector<8x8xf32> to vector<1x8x8xf32>
    %47 = vector.shape_cast %39 : vector<8x8xf32> to vector<1x8x8xf32>
    %48 = vector.shape_cast %40 : vector<8x8xf32> to vector<1x8x8xf32>
    %49 = vector.shape_cast %41 : vector<8x8xf32> to vector<1x8x8xf32>
    %50 = vector.shape_cast %42 : vector<8x8xf32> to vector<1x8x8xf32>
    %51 = vector.shape_cast %43 : vector<8x8xf32> to vector<1x8x8xf32>
    %52 = vector.shape_cast %44 : vector<8x8xf32> to vector<1x8x8xf32>
    %53 = tpu.concatenate %45, %46, %47, %48, %49, %50, %51, %52 in 0 : vector<1x8x8xf32>, vector<1x8x8xf32>, vector<1x8x8xf32>, vector<1x8x8xf32>, vector<1x8x8xf32>, vector<1x8x8xf32>, vector<1x8x8xf32>, vector<1x8x8xf32> -> vector<8x8x8xf32>
    %54 = vector.extract_strided_slice %35 {offsets = [0, 0], sizes = [8, 8], strides = [1, 1]} : vector<16x32xf32> to vector<8x8xf32>
    %55 = vector.extract_strided_slice %35 {offsets = [0, 8], sizes = [8, 8], strides = [1, 1]} : vector<16x32xf32> to vector<8x8xf32>
    %56 = vector.extract_strided_slice %35 {offsets = [0, 16], sizes = [8, 8], strides = [1, 1]} : vector<16x32xf32> to vector<8x8xf32>
    %57 = vector.extract_strided_slice %35 {offsets = [0, 24], sizes = [8, 8], strides = [1, 1]} : vector<16x32xf32> to vector<8x8xf32>
    %58 = vector.extract_strided_slice %35 {offsets = [8, 0], sizes = [8, 8], strides = [1, 1]} : vector<16x32xf32> to vector<8x8xf32>
    %59 = vector.extract_strided_slice %35 {offsets = [8, 8], sizes = [8, 8], strides = [1, 1]} : vector<16x32xf32> to vector<8x8xf32>
    %60 = vector.extract_strided_slice %35 {offsets = [8, 16], sizes = [8, 8], strides = [1, 1]} : vector<16x32xf32> to vector<8x8xf32>
    %61 = vector.extract_strided_slice %35 {offsets = [8, 24], sizes = [8, 8], strides = [1, 1]} : vector<16x32xf32> to vector<8x8xf32>
    %62 = vector.shape_cast %54 : vector<8x8xf32> to vector<1x8x8xf32>
    %63 = vector.shape_cast %55 : vector<8x8xf32> to vector<1x8x8xf32>
    %64 = vector.shape_cast %56 : vector<8x8xf32> to vector<1x8x8xf32>
    %65 = vector.shape_cast %57 : vector<8x8xf32> to vector<1x8x8xf32>
    %66 = vector.shape_cast %58 : vector<8x8xf32> to vector<1x8x8xf32>
    %67 = vector.shape_cast %59 : vector<8x8xf32> to vector<1x8x8xf32>
    %68 = vector.shape_cast %60 : vector<8x8xf32> to vector<1x8x8xf32>
    %69 = vector.shape_cast %61 : vector<8x8xf32> to vector<1x8x8xf32>
    %70 = tpu.concatenate %62, %63, %64, %65, %66, %67, %68, %69 in 0 : vector<1x8x8xf32>, vector<1x8x8xf32>, vector<1x8x8xf32>, vector<1x8x8xf32>, vector<1x8x8xf32>, vector<1x8x8xf32>, vector<1x8x8xf32>, vector<1x8x8xf32> -> vector<8x8x8xf32>
    %71 = vector.extract_strided_slice %36 {offsets = [0, 0], sizes = [8, 8], strides = [1, 1]} : vector<16x32xf32> to vector<8x8xf32>
    %72 = vector.extract_strided_slice %36 {offsets = [0, 8], sizes = [8, 8], strides = [1, 1]} : vector<16x32xf32> to vector<8x8xf32>
    %73 = vector.extract_strided_slice %36 {offsets = [0, 16], sizes = [8, 8], strides = [1, 1]} : vector<16x32xf32> to vector<8x8xf32>
    %74 = vector.extract_strided_slice %36 {offsets = [0, 24], sizes = [8, 8], strides = [1, 1]} : vector<16x32xf32> to vector<8x8xf32>
    %75 = vector.extract_strided_slice %36 {offsets = [8, 0], sizes = [8, 8], strides = [1, 1]} : vector<16x32xf32> to vector<8x8xf32>
    %76 = vector.extract_strided_slice %36 {offsets = [8, 8], sizes = [8, 8], strides = [1, 1]} : vector<16x32xf32> to vector<8x8xf32>
    %77 = vector.extract_strided_slice %36 {offsets = [8, 16], sizes = [8, 8], strides = [1, 1]} : vector<16x32xf32> to vector<8x8xf32>
    %78 = vector.extract_strided_slice %36 {offsets = [8, 24], sizes = [8, 8], strides = [1, 1]} : vector<16x32xf32> to vector<8x8xf32>
    %79 = vector.shape_cast %71 : vector<8x8xf32> to vector<1x8x8xf32>
    %80 = vector.shape_cast %72 : vector<8x8xf32> to vector<1x8x8xf32>
    %81 = vector.shape_cast %73 : vector<8x8xf32> to vector<1x8x8xf32>
    %82 = vector.shape_cast %74 : vector<8x8xf32> to vector<1x8x8xf32>
    %83 = vector.shape_cast %75 : vector<8x8xf32> to vector<1x8x8xf32>
    %84 = vector.shape_cast %76 : vector<8x8xf32> to vector<1x8x8xf32>
    %85 = vector.shape_cast %77 : vector<8x8xf32> to vector<1x8x8xf32>
    %86 = vector.shape_cast %78 : vector<8x8xf32> to vector<1x8x8xf32>
    %87 = tpu.concatenate %79, %80, %81, %82, %83, %84, %85, %86 in 0 : vector<1x8x8xf32>, vector<1x8x8xf32>, vector<1x8x8xf32>, vector<1x8x8xf32>, vector<1x8x8xf32>, vector<1x8x8xf32>, vector<1x8x8xf32>, vector<1x8x8xf32> -> vector<8x8x8xf32>
    "tpu.trace_start"() <{level = 10 : i32, message = "bqd,bkd->bqk"}> : () -> ()
    %cst_19 = arith.constant dense<0.000000e+00> : vector<8x8x8xf32>
    %88 = tpu.matmul %53, %70, %cst_19 {dimension_numbers = #tpu.dot_dimension_numbers<[2], [2], [1], [1], [0, 0, 0, 1, 1, 1], [0], [0]>} : vector<8x8x8xf32>, vector<8x8x8xf32>, vector<8x8x8xf32> -> vector<8x8x8xf32>
    "tpu.trace_stop"() : () -> ()
    %cst_20 = arith.constant 0.353553385 : f32
    %89 = vector.broadcast %cst_20 : f32 to vector<8x8x8xf32>
    %90 = arith.mulf %88, %89 : vector<8x8x8xf32>
    %91 = vector.broadcast %25 : vector<8x1x8xf32> to vector<8x8x8xf32>
    %92 = arith.addf %90, %91 : vector<8x8x8xf32>
    %cst_21 = arith.constant dense<0xFF800000> : vector<8x8xf32>
    %93 = vector.multi_reduction <maximumf>, %92, %cst_21 [2] : vector<8x8x8xf32> to vector<8x8xf32>
    %94 = vector.shape_cast %93 : vector<8x8xf32> to vector<8x8x1xf32>
    %95 = vector.broadcast %94 : vector<8x8x1xf32> to vector<8x8x8xf32>
    %96 = arith.subf %92, %95 : vector<8x8x8xf32>
    %97 = math.exp %96 : vector<8x8x8xf32>
    %cst_22 = arith.constant dense<0.000000e+00> : vector<8x8xf32>
    %98 = vector.multi_reduction <add>, %97, %cst_22 [2] : vector<8x8x8xf32> to vector<8x8xf32>
    %99 = vector.shape_cast %98 : vector<8x8xf32> to vector<8x8x1xf32>
    %100 = tpu.reciprocal %99 {approx = true} : vector<8x8x1xf32> -> vector<8x8x1xf32>
    %101 = vector.broadcast %100 : vector<8x8x1xf32> to vector<8x8x8xf32>
    %102 = arith.mulf %97, %101 : vector<8x8x8xf32>
    "tpu.trace_start"() <{level = 10 : i32, message = "bqk,bkd->bqd"}> : () -> ()
    %cst_23 = arith.constant dense<0.000000e+00> : vector<8x8x8xf32>
    %103 = tpu.matmul %102, %87, %cst_23 {dimension_numbers = #tpu.dot_dimension_numbers<[2], [1], [1], [2], [0, 0, 0, 1, 1, 2], [0], [0]>} : vector<8x8x8xf32>, vector<8x8x8xf32>, vector<8x8x8xf32> -> vector<8x8x8xf32>
    "tpu.trace_stop"() : () -> ()
    %104 = vector.extract_strided_slice %103 {offsets = [0, 0, 0], sizes = [1, 8, 8], strides = [1, 1, 1]} : vector<8x8x8xf32> to vector<1x8x8xf32>
    %105 = vector.shape_cast %104 : vector<1x8x8xf32> to vector<8x8xf32>
    %106 = vector.extract_strided_slice %103 {offsets = [1, 0, 0], sizes = [1, 8, 8], strides = [1, 1, 1]} : vector<8x8x8xf32> to vector<1x8x8xf32>
    %107 = vector.shape_cast %106 : vector<1x8x8xf32> to vector<8x8xf32>
    %108 = vector.extract_strided_slice %103 {offsets = [2, 0, 0], sizes = [1, 8, 8], strides = [1, 1, 1]} : vector<8x8x8xf32> to vector<1x8x8xf32>
    %109 = vector.shape_cast %108 : vector<1x8x8xf32> to vector<8x8xf32>
    %110 = vector.extract_strided_slice %103 {offsets = [3, 0, 0], sizes = [1, 8, 8], strides = [1, 1, 1]} : vector<8x8x8xf32> to vector<1x8x8xf32>
    %111 = vector.shape_cast %110 : vector<1x8x8xf32> to vector<8x8xf32>
    %112 = tpu.concatenate %105, %107, %109, %111 in 1 : vector<8x8xf32>, vector<8x8xf32>, vector<8x8xf32>, vector<8x8xf32> -> vector<8x32xf32>
    %113 = vector.extract_strided_slice %103 {offsets = [4, 0, 0], sizes = [1, 8, 8], strides = [1, 1, 1]} : vector<8x8x8xf32> to vector<1x8x8xf32>
    %114 = vector.shape_cast %113 : vector<1x8x8xf32> to vector<8x8xf32>
    %115 = vector.extract_strided_slice %103 {offsets = [5, 0, 0], sizes = [1, 8, 8], strides = [1, 1, 1]} : vector<8x8x8xf32> to vector<1x8x8xf32>
    %116 = vector.shape_cast %115 : vector<1x8x8xf32> to vector<8x8xf32>
    %117 = vector.extract_strided_slice %103 {offsets = [6, 0, 0], sizes = [1, 8, 8], strides = [1, 1, 1]} : vector<8x8x8xf32> to vector<1x8x8xf32>
    %118 = vector.shape_cast %117 : vector<1x8x8xf32> to vector<8x8xf32>
    %119 = vector.extract_strided_slice %103 {offsets = [7, 0, 0], sizes = [1, 8, 8], strides = [1, 1, 1]} : vector<8x8x8xf32> to vector<1x8x8xf32>
    %120 = vector.shape_cast %119 : vector<1x8x8xf32> to vector<8x8xf32>
    %121 = tpu.concatenate %114, %116, %118, %120 in 1 : vector<8x8xf32>, vector<8x8xf32>, vector<8x8xf32>, vector<8x8xf32> -> vector<8x32xf32>
    %122 = tpu.concatenate %112, %121 in 0 : vector<8x32xf32>, vector<8x32xf32> -> vector<16x32xf32>
    %123 = arith.truncf %122 : vector<16x32xf32> to vector<16x32xbf16>
    %c0_24 = arith.constant 0 : index
    %c0_25 = arith.constant 0 : index
    %c0_26 = arith.constant 0 : index
    %124 = vector.load %arg6[%c0_24, %c0_25, %c0_26] : memref<2x32x32xbf16, #tpu.memory_space<vmem>>, vector<1x32x32xbf16>
    %125 = vector.shape_cast %124 : vector<1x32x32xbf16> to vector<32x32xbf16>
    %cst_27 = arith.constant dense<0.000000e+00> : vector<16x32xf32>
    %126 = tpu.matmul %123, %125, %cst_27 {dimension_numbers = #tpu.dot_dimension_numbers<[1], [0], [0], [1], [0, 0, 1, 1], [], []>} : vector<16x32xbf16>, vector<32x32xbf16>, vector<16x32xf32> -> vector<16x32xf32>
    %c0_28 = arith.constant 0 : index
    %c0_29 = arith.constant 0 : index
    %c0_30 = arith.constant 0 : index
    %127 = vector.load %arg7[%c0_28, %c0_29, %c0_30] : memref<2x1x32xf32, #tpu.memory_space<vmem>>, vector<1x1x32xf32>
    %128 = vector.shape_cast %127 : vector<1x1x32xf32> to vector<1x32xf32>
    %129 = vector.broadcast %128 : vector<1x32xf32> to vector<16x32xf32>
    %130 = arith.addf %126, %129 : vector<16x32xf32>
    %131 = arith.addf %24, %130 : vector<16x32xf32>
    %c0_31 = arith.constant 0 : index
    %c0_32 = arith.constant 0 : index
    %c0_33 = arith.constant 0 : index
    %132 = vector.load %arg8[%c0_31, %c0_32, %c0_33] : memref<2x1x32xf32, #tpu.memory_space<vmem>>, vector<1x1x32xf32>
    %133 = vector.shape_cast %132 : vector<1x1x32xf32> to vector<1x32xf32>
    %c0_34 = arith.constant 0 : index
    %c0_35 = arith.constant 0 : index
    %c0_36 = arith.constant 0 : index
    %134 = vector.load %arg9[%c0_34, %c0_35, %c0_36] : memref<2x1x32xf32, #tpu.memory_space<vmem>>, vector<1x1x32xf32>
    %135 = vector.shape_cast %134 : vector<1x1x32xf32> to vector<1x32xf32>
    %cst_37 = arith.constant dense<0.000000e+00> : vector<16xf32>
    %136 = vector.multi_reduction <add>, %131, %cst_37 [1] : vector<16x32xf32> to vector<16xf32>
    %137 = vector.shape_cast %136 : vector<16xf32> to vector<16x1xf32>
    %cst_38 = arith.constant 3.200000e+01 : f32
    %138 = vector.broadcast %cst_38 : f32 to vector<16x1xf32>
    %139 = arith.divf %137, %138 : vector<16x1xf32>
    %140 = vector.broadcast %139 : vector<16x1xf32> to vector<16x32xf32>
    %141 = arith.subf %131, %140 : vector<16x32xf32>
    %142 = arith.mulf %141, %141 : vector<16x32xf32>
    %cst_39 = arith.constant dense<0.000000e+00> : vector<16xf32>
    %143 = vector.multi_reduction <add>, %142, %cst_39 [1] : vector<16x32xf32> to vector<16xf32>
    %144 = vector.shape_cast %143 : vector<16xf32> to vector<16x1xf32>
    %cst_40 = arith.constant 3.200000e+01 : f32
    %145 = vector.broadcast %cst_40 : f32 to vector<16x1xf32>
    %146 = arith.divf %144, %145 : vector<16x1xf32>
    %147 = vector.broadcast %139 : vector<16x1xf32> to vector<16x32xf32>
    %148 = arith.subf %131, %147 : vector<16x32xf32>
    %cst_41 = arith.constant 9.99999996E-13 : f32
    %149 = vector.broadcast %cst_41 : f32 to vector<16x1xf32>
    %150 = arith.addf %146, %149 : vector<16x1xf32>
    %151 = math.rsqrt %150 : vector<16x1xf32>
    %152 = vector.broadcast %151 : vector<16x1xf32> to vector<16x32xf32>
    %153 = arith.mulf %148, %152 : vector<16x32xf32>
    %154 = vector.broadcast %133 : vector<1x32xf32> to vector<16x32xf32>
    %155 = arith.mulf %153, %154 : vector<16x32xf32>
    %156 = vector.broadcast %135 : vector<1x32xf32> to vector<16x32xf32>
    %157 = arith.addf %155, %156 : vector<16x32xf32>
    %158 = arith.truncf %157 : vector<16x32xf32> to vector<16x32xbf16>
    %c0_42 = arith.constant 0 : index
    %c0_43 = arith.constant 0 : index
    %c0_44 = arith.constant 0 : index
    %159 = vector.load %arg10[%c0_42, %c0_43, %c0_44] : memref<2x32x64xbf16, #tpu.memory_space<vmem>>, vector<1x32x64xbf16>
    %160 = vector.shape_cast %159 : vector<1x32x64xbf16> to vector<32x64xbf16>
    %cst_45 = arith.constant dense<0.000000e+00> : vector<16x64xf32>
    %161 = tpu.matmul %158, %160, %cst_45 {dimension_numbers = #tpu.dot_dimension_numbers<[1], [0], [0], [1], [0, 0, 1, 1], [], []>} : vector<16x32xbf16>, vector<32x64xbf16>, vector<16x64xf32> -> vector<16x64xf32>
    %c0_46 = arith.constant 0 : index
    %c0_47 = arith.constant 0 : index
    %c0_48 = arith.constant 0 : index
    %162 = vector.load %arg11[%c0_46, %c0_47, %c0_48] : memref<2x1x64xf32, #tpu.memory_space<vmem>>, vector<1x1x64xf32>
    %163 = vector.shape_cast %162 : vector<1x1x64xf32> to vector<1x64xf32>
    %164 = vector.broadcast %163 : vector<1x64xf32> to vector<16x64xf32>
    %165 = arith.addf %161, %164 : vector<16x64xf32>
    %166 = arith.mulf %165, %165 : vector<16x64xf32>
    %167 = arith.mulf %165, %166 : vector<16x64xf32>
    %cst_49 = arith.constant 4.471500e-02 : f32
    %168 = vector.broadcast %cst_49 : f32 to vector<16x64xf32>
    %169 = arith.mulf %168, %167 : vector<16x64xf32>
    %170 = arith.addf %165, %169 : vector<16x64xf32>
    %cst_50 = arith.constant 0.797884583 : f32
    %171 = vector.broadcast %cst_50 : f32 to vector<16x64xf32>
    %172 = arith.mulf %171, %170 : vector<16x64xf32>
    %173 = math.tanh %172 : vector<16x64xf32>
    %cst_51 = arith.constant 1.000000e+00 : f32
    %174 = vector.broadcast %cst_51 : f32 to vector<16x64xf32>
    %175 = arith.addf %174, %173 : vector<16x64xf32>
    %cst_52 = arith.constant 5.000000e-01 : f32
    %176 = vector.broadcast %cst_52 : f32 to vector<16x64xf32>
    %177 = arith.mulf %176, %175 : vector<16x64xf32>
    %178 = arith.mulf %165, %177 : vector<16x64xf32>
    %179 = arith.truncf %178 : vector<16x64xf32> to vector<16x64xbf16>
    %c0_53 = arith.constant 0 : index
    %c0_54 = arith.constant 0 : index
    %c0_55 = arith.constant 0 : index
    %180 = vector.load %arg12[%c0_53, %c0_54, %c0_55] : memref<2x64x32xbf16, #tpu.memory_space<vmem>>, vector<1x64x32xbf16>
    %181 = vector.shape_cast %180 : vector<1x64x32xbf16> to vector<64x32xbf16>
    %cst_56 = arith.constant dense<0.000000e+00> : vector<16x32xf32>
    %182 = tpu.matmul %179, %181, %cst_56 {dimension_numbers = #tpu.dot_dimension_numbers<[1], [0], [0], [1], [0, 0, 1, 1], [], []>} : vector<16x64xbf16>, vector<64x32xbf16>, vector<16x32xf32> -> vector<16x32xf32>
    %c0_57 = arith.constant 0 : index
    %c0_58 = arith.constant 0 : index
    %c0_59 = arith.constant 0 : index
    %183 = vector.load %arg13[%c0_57, %c0_58, %c0_59] : memref<2x1x32xf32, #tpu.memory_space<vmem>>, vector<1x1x32xf32>
    %184 = vector.shape_cast %183 : vector<1x1x32xf32> to vector<1x32xf32>
    %185 = vector.broadcast %184 : vector<1x32xf32> to vector<16x32xf32>
    %186 = arith.addf %182, %185 : vector<16x32xf32>
    %187 = arith.addf %157, %186 : vector<16x32xf32>
    %c0_60 = arith.constant 0 : index
    %c0_61 = arith.constant 0 : index
    %c0_62 = arith.constant 0 : index
    %188 = vector.load %arg14[%c0_60, %c0_61, %c0_62] : memref<2x1x32xf32, #tpu.memory_space<vmem>>, vector<1x1x32xf32>
    %189 = vector.shape_cast %188 : vector<1x1x32xf32> to vector<1x32xf32>
    %c0_63 = arith.constant 0 : index
    %c0_64 = arith.constant 0 : index
    %c0_65 = arith.constant 0 : index
    %190 = vector.load %arg15[%c0_63, %c0_64, %c0_65] : memref<2x1x32xf32, #tpu.memory_space<vmem>>, vector<1x1x32xf32>
    %191 = vector.shape_cast %190 : vector<1x1x32xf32> to vector<1x32xf32>
    %cst_66 = arith.constant dense<0.000000e+00> : vector<16xf32>
    %192 = vector.multi_reduction <add>, %187, %cst_66 [1] : vector<16x32xf32> to vector<16xf32>
    %193 = vector.shape_cast %192 : vector<16xf32> to vector<16x1xf32>
    %cst_67 = arith.constant 3.200000e+01 : f32
    %194 = vector.broadcast %cst_67 : f32 to vector<16x1xf32>
    %195 = arith.divf %193, %194 : vector<16x1xf32>
    %196 = vector.broadcast %195 : vector<16x1xf32> to vector<16x32xf32>
    %197 = arith.subf %187, %196 : vector<16x32xf32>
    %198 = arith.mulf %197, %197 : vector<16x32xf32>
    %cst_68 = arith.constant dense<0.000000e+00> : vector<16xf32>
    %199 = vector.multi_reduction <add>, %198, %cst_68 [1] : vector<16x32xf32> to vector<16xf32>
    %200 = vector.shape_cast %199 : vector<16xf32> to vector<16x1xf32>
    %cst_69 = arith.constant 3.200000e+01 : f32
    %201 = vector.broadcast %cst_69 : f32 to vector<16x1xf32>
    %202 = arith.divf %200, %201 : vector<16x1xf32>
    %203 = vector.broadcast %195 : vector<16x1xf32> to vector<16x32xf32>
    %204 = arith.subf %187, %203 : vector<16x32xf32>
    %cst_70 = arith.constant 9.99999996E-13 : f32
    %205 = vector.broadcast %cst_70 : f32 to vector<16x1xf32>
    %206 = arith.addf %202, %205 : vector<16x1xf32>
    %207 = math.rsqrt %206 : vector<16x1xf32>
    %208 = vector.broadcast %207 : vector<16x1xf32> to vector<16x32xf32>
    %209 = arith.mulf %204, %208 : vector<16x32xf32>
    %210 = vector.broadcast %189 : vector<1x32xf32> to vector<16x32xf32>
    %211 = arith.mulf %209, %210 : vector<16x32xf32>
    %212 = vector.broadcast %191 : vector<1x32xf32> to vector<16x32xf32>
    %213 = arith.addf %211, %212 : vector<16x32xf32>
    %214 = arith.truncf %213 : vector<16x32xf32> to vector<16x32xbf16>
    %c1 = arith.constant 1 : index
    %c0_71 = arith.constant 0 : index
    %c0_72 = arith.constant 0 : index
    %215 = vector.load %arg4[%c1, %c0_71, %c0_72] : memref<2x32x96xbf16, #tpu.memory_space<vmem>>, vector<1x32x96xbf16>
    %216 = vector.shape_cast %215 : vector<1x32x96xbf16> to vector<32x96xbf16>
    %cst_73 = arith.constant dense<0.000000e+00> : vector<16x96xf32>
    %217 = tpu.matmul %214, %216, %cst_73 {dimension_numbers = #tpu.dot_dimension_numbers<[1], [0], [0], [1], [0, 0, 1, 1], [], []>} : vector<16x32xbf16>, vector<32x96xbf16>, vector<16x96xf32> -> vector<16x96xf32>
    %c1_74 = arith.constant 1 : index
    %c0_75 = arith.constant 0 : index
    %c0_76 = arith.constant 0 : index
    %218 = vector.load %arg5[%c1_74, %c0_75, %c0_76] : memref<2x1x96xf32, #tpu.memory_space<vmem>>, vector<1x1x96xf32>
    %219 = vector.shape_cast %218 : vector<1x1x96xf32> to vector<1x96xf32>
    %220 = vector.broadcast %219 : vector<1x96xf32> to vector<16x96xf32>
    %221 = arith.addf %217, %220 : vector<16x96xf32>
    %222 = vector.extract_strided_slice %221 {offsets = [0, 0], sizes = [16, 32], strides = [1, 1]} : vector<16x96xf32> to vector<16x32xf32>
    %223 = vector.extract_strided_slice %221 {offsets = [0, 32], sizes = [16, 32], strides = [1, 1]} : vector<16x96xf32> to vector<16x32xf32>
    %224 = vector.extract_strided_slice %221 {offsets = [0, 64], sizes = [16, 32], strides = [1, 1]} : vector<16x96xf32> to vector<16x32xf32>
    %225 = vector.extract_strided_slice %222 {offsets = [0, 0], sizes = [8, 8], strides = [1, 1]} : vector<16x32xf32> to vector<8x8xf32>
    %226 = vector.extract_strided_slice %222 {offsets = [0, 8], sizes = [8, 8], strides = [1, 1]} : vector<16x32xf32> to vector<8x8xf32>
    %227 = vector.extract_strided_slice %222 {offsets = [0, 16], sizes = [8, 8], strides = [1, 1]} : vector<16x32xf32> to vector<8x8xf32>
    %228 = vector.extract_strided_slice %222 {offsets = [0, 24], sizes = [8, 8], strides = [1, 1]} : vector<16x32xf32> to vector<8x8xf32>
    %229 = vector.extract_strided_slice %222 {offsets = [8, 0], sizes = [8, 8], strides = [1, 1]} : vector<16x32xf32> to vector<8x8xf32>
    %230 = vector.extract_strided_slice %222 {offsets = [8, 8], sizes = [8, 8], strides = [1, 1]} : vector<16x32xf32> to vector<8x8xf32>
    %231 = vector.extract_strided_slice %222 {offsets = [8, 16], sizes = [8, 8], strides = [1, 1]} : vector<16x32xf32> to vector<8x8xf32>
    %232 = vector.extract_strided_slice %222 {offsets = [8, 24], sizes = [8, 8], strides = [1, 1]} : vector<16x32xf32> to vector<8x8xf32>
    %233 = vector.shape_cast %225 : vector<8x8xf32> to vector<1x8x8xf32>
    %234 = vector.shape_cast %226 : vector<8x8xf32> to vector<1x8x8xf32>
    %235 = vector.shape_cast %227 : vector<8x8xf32> to vector<1x8x8xf32>
    %236 = vector.shape_cast %228 : vector<8x8xf32> to vector<1x8x8xf32>
    %237 = vector.shape_cast %229 : vector<8x8xf32> to vector<1x8x8xf32>
    %238 = vector.shape_cast %230 : vector<8x8xf32> to vector<1x8x8xf32>
    %239 = vector.shape_cast %231 : vector<8x8xf32> to vector<1x8x8xf32>
    %240 = vector.shape_cast %232 : vector<8x8xf32> to vector<1x8x8xf32>
    %241 = tpu.concatenate %233, %234, %235, %236, %237, %238, %239, %240 in 0 : vector<1x8x8xf32>, vector<1x8x8xf32>, vector<1x8x8xf32>, vector<1x8x8xf32>, vector<1x8x8xf32>, vector<1x8x8xf32>, vector<1x8x8xf32>, vector<1x8x8xf32> -> vector<8x8x8xf32>
    %242 = vector.extract_strided_slice %223 {offsets = [0, 0], sizes = [8, 8], strides = [1, 1]} : vector<16x32xf32> to vector<8x8xf32>
    %243 = vector.extract_strided_slice %223 {offsets = [0, 8], sizes = [8, 8], strides = [1, 1]} : vector<16x32xf32> to vector<8x8xf32>
    %244 = vector.extract_strided_slice %223 {offsets = [0, 16], sizes = [8, 8], strides = [1, 1]} : vector<16x32xf32> to vector<8x8xf32>
    %245 = vector.extract_strided_slice %223 {offsets = [0, 24], sizes = [8, 8], strides = [1, 1]} : vector<16x32xf32> to vector<8x8xf32>
    %246 = vector.extract_strided_slice %223 {offsets = [8, 0], sizes = [8, 8], strides = [1, 1]} : vector<16x32xf32> to vector<8x8xf32>
    %247 = vector.extract_strided_slice %223 {offsets = [8, 8], sizes = [8, 8], strides = [1, 1]} : vector<16x32xf32> to vector<8x8xf32>
    %248 = vector.extract_strided_slice %223 {offsets = [8, 16], sizes = [8, 8], strides = [1, 1]} : vector<16x32xf32> to vector<8x8xf32>
    %249 = vector.extract_strided_slice %223 {offsets = [8, 24], sizes = [8, 8], strides = [1, 1]} : vector<16x32xf32> to vector<8x8xf32>
    %250 = vector.shape_cast %242 : vector<8x8xf32> to vector<1x8x8xf32>
    %251 = vector.shape_cast %243 : vector<8x8xf32> to vector<1x8x8xf32>
    %252 = vector.shape_cast %244 : vector<8x8xf32> to vector<1x8x8xf32>
    %253 = vector.shape_cast %245 : vector<8x8xf32> to vector<1x8x8xf32>
    %254 = vector.shape_cast %246 : vector<8x8xf32> to vector<1x8x8xf32>
    %255 = vector.shape_cast %247 : vector<8x8xf32> to vector<1x8x8xf32>
    %256 = vector.shape_cast %248 : vector<8x8xf32> to vector<1x8x8xf32>
    %257 = vector.shape_cast %249 : vector<8x8xf32> to vector<1x8x8xf32>
    %258 = tpu.concatenate %250, %251, %252, %253, %254, %255, %256, %257 in 0 : vector<1x8x8xf32>, vector<1x8x8xf32>, vector<1x8x8xf32>, vector<1x8x8xf32>, vector<1x8x8xf32>, vector<1x8x8xf32>, vector<1x8x8xf32>, vector<1x8x8xf32> -> vector<8x8x8xf32>
    %259 = vector.extract_strided_slice %224 {offsets = [0, 0], sizes = [8, 8], strides = [1, 1]} : vector<16x32xf32> to vector<8x8xf32>
    %260 = vector.extract_strided_slice %224 {offsets = [0, 8], sizes = [8, 8], strides = [1, 1]} : vector<16x32xf32> to vector<8x8xf32>
    %261 = vector.extract_strided_slice %224 {offsets = [0, 16], sizes = [8, 8], strides = [1, 1]} : vector<16x32xf32> to vector<8x8xf32>
    %262 = vector.extract_strided_slice %224 {offsets = [0, 24], sizes = [8, 8], strides = [1, 1]} : vector<16x32xf32> to vector<8x8xf32>
    %263 = vector.extract_strided_slice %224 {offsets = [8, 0], sizes = [8, 8], strides = [1, 1]} : vector<16x32xf32> to vector<8x8xf32>
    %264 = vector.extract_strided_slice %224 {offsets = [8, 8], sizes = [8, 8], strides = [1, 1]} : vector<16x32xf32> to vector<8x8xf32>
    %265 = vector.extract_strided_slice %224 {offsets = [8, 16], sizes = [8, 8], strides = [1, 1]} : vector<16x32xf32> to vector<8x8xf32>
    %266 = vector.extract_strided_slice %224 {offsets = [8, 24], sizes = [8, 8], strides = [1, 1]} : vector<16x32xf32> to vector<8x8xf32>
    %267 = vector.shape_cast %259 : vector<8x8xf32> to vector<1x8x8xf32>
    %268 = vector.shape_cast %260 : vector<8x8xf32> to vector<1x8x8xf32>
    %269 = vector.shape_cast %261 : vector<8x8xf32> to vector<1x8x8xf32>
    %270 = vector.shape_cast %262 : vector<8x8xf32> to vector<1x8x8xf32>
    %271 = vector.shape_cast %263 : vector<8x8xf32> to vector<1x8x8xf32>
    %272 = vector.shape_cast %264 : vector<8x8xf32> to vector<1x8x8xf32>
    %273 = vector.shape_cast %265 : vector<8x8xf32> to vector<1x8x8xf32>
    %274 = vector.shape_cast %266 : vector<8x8xf32> to vector<1x8x8xf32>
    %275 = tpu.concatenate %267, %268, %269, %270, %271, %272, %273, %274 in 0 : vector<1x8x8xf32>, vector<1x8x8xf32>, vector<1x8x8xf32>, vector<1x8x8xf32>, vector<1x8x8xf32>, vector<1x8x8xf32>, vector<1x8x8xf32>, vector<1x8x8xf32> -> vector<8x8x8xf32>
    "tpu.trace_start"() <{level = 10 : i32, message = "bqd,bkd->bqk"}> : () -> ()
    %cst_77 = arith.constant dense<0.000000e+00> : vector<8x8x8xf32>
    %276 = tpu.matmul %241, %258, %cst_77 {dimension_numbers = #tpu.dot_dimension_numbers<[2], [2], [1], [1], [0, 0, 0, 1, 1, 1], [0], [0]>} : vector<8x8x8xf32>, vector<8x8x8xf32>, vector<8x8x8xf32> -> vector<8x8x8xf32>
    "tpu.trace_stop"() : () -> ()
    %cst_78 = arith.constant 0.353553385 : f32
    %277 = vector.broadcast %cst_78 : f32 to vector<8x8x8xf32>
    %278 = arith.mulf %276, %277 : vector<8x8x8xf32>
    %279 = vector.broadcast %25 : vector<8x1x8xf32> to vector<8x8x8xf32>
    %280 = arith.addf %278, %279 : vector<8x8x8xf32>
    %cst_79 = arith.constant dense<0xFF800000> : vector<8x8xf32>
    %281 = vector.multi_reduction <maximumf>, %280, %cst_79 [2] : vector<8x8x8xf32> to vector<8x8xf32>
    %282 = vector.shape_cast %281 : vector<8x8xf32> to vector<8x8x1xf32>
    %283 = vector.broadcast %282 : vector<8x8x1xf32> to vector<8x8x8xf32>
    %284 = arith.subf %280, %283 : vector<8x8x8xf32>
    %285 = math.exp %284 : vector<8x8x8xf32>
    %cst_80 = arith.constant dense<0.000000e+00> : vector<8x8xf32>
    %286 = vector.multi_reduction <add>, %285, %cst_80 [2] : vector<8x8x8xf32> to vector<8x8xf32>
    %287 = vector.shape_cast %286 : vector<8x8xf32> to vector<8x8x1xf32>
    %288 = tpu.reciprocal %287 {approx = true} : vector<8x8x1xf32> -> vector<8x8x1xf32>
    %289 = vector.broadcast %288 : vector<8x8x1xf32> to vector<8x8x8xf32>
    %290 = arith.mulf %285, %289 : vector<8x8x8xf32>
    "tpu.trace_start"() <{level = 10 : i32, message = "bqk,bkd->bqd"}> : () -> ()
    %cst_81 = arith.constant dense<0.000000e+00> : vector<8x8x8xf32>
    %291 = tpu.matmul %290, %275, %cst_81 {dimension_numbers = #tpu.dot_dimension_numbers<[2], [1], [1], [2], [0, 0, 0, 1, 1, 2], [0], [0]>} : vector<8x8x8xf32>, vector<8x8x8xf32>, vector<8x8x8xf32> -> vector<8x8x8xf32>
    "tpu.trace_stop"() : () -> ()
    %292 = vector.extract_strided_slice %291 {offsets = [0, 0, 0], sizes = [1, 8, 8], strides = [1, 1, 1]} : vector<8x8x8xf32> to vector<1x8x8xf32>
    %293 = vector.shape_cast %292 : vector<1x8x8xf32> to vector<8x8xf32>
    %294 = vector.extract_strided_slice %291 {offsets = [1, 0, 0], sizes = [1, 8, 8], strides = [1, 1, 1]} : vector<8x8x8xf32> to vector<1x8x8xf32>
    %295 = vector.shape_cast %294 : vector<1x8x8xf32> to vector<8x8xf32>
    %296 = vector.extract_strided_slice %291 {offsets = [2, 0, 0], sizes = [1, 8, 8], strides = [1, 1, 1]} : vector<8x8x8xf32> to vector<1x8x8xf32>
    %297 = vector.shape_cast %296 : vector<1x8x8xf32> to vector<8x8xf32>
    %298 = vector.extract_strided_slice %291 {offsets = [3, 0, 0], sizes = [1, 8, 8], strides = [1, 1, 1]} : vector<8x8x8xf32> to vector<1x8x8xf32>
    %299 = vector.shape_cast %298 : vector<1x8x8xf32> to vector<8x8xf32>
    %300 = tpu.concatenate %293, %295, %297, %299 in 1 : vector<8x8xf32>, vector<8x8xf32>, vector<8x8xf32>, vector<8x8xf32> -> vector<8x32xf32>
    %301 = vector.extract_strided_slice %291 {offsets = [4, 0, 0], sizes = [1, 8, 8], strides = [1, 1, 1]} : vector<8x8x8xf32> to vector<1x8x8xf32>
    %302 = vector.shape_cast %301 : vector<1x8x8xf32> to vector<8x8xf32>
    %303 = vector.extract_strided_slice %291 {offsets = [5, 0, 0], sizes = [1, 8, 8], strides = [1, 1, 1]} : vector<8x8x8xf32> to vector<1x8x8xf32>
    %304 = vector.shape_cast %303 : vector<1x8x8xf32> to vector<8x8xf32>
    %305 = vector.extract_strided_slice %291 {offsets = [6, 0, 0], sizes = [1, 8, 8], strides = [1, 1, 1]} : vector<8x8x8xf32> to vector<1x8x8xf32>
    %306 = vector.shape_cast %305 : vector<1x8x8xf32> to vector<8x8xf32>
    %307 = vector.extract_strided_slice %291 {offsets = [7, 0, 0], sizes = [1, 8, 8], strides = [1, 1, 1]} : vector<8x8x8xf32> to vector<1x8x8xf32>
    %308 = vector.shape_cast %307 : vector<1x8x8xf32> to vector<8x8xf32>
    %309 = tpu.concatenate %302, %304, %306, %308 in 1 : vector<8x8xf32>, vector<8x8xf32>, vector<8x8xf32>, vector<8x8xf32> -> vector<8x32xf32>
    %310 = tpu.concatenate %300, %309 in 0 : vector<8x32xf32>, vector<8x32xf32> -> vector<16x32xf32>
    %311 = arith.truncf %310 : vector<16x32xf32> to vector<16x32xbf16>
    %c1_82 = arith.constant 1 : index
    %c0_83 = arith.constant 0 : index
    %c0_84 = arith.constant 0 : index
    %312 = vector.load %arg6[%c1_82, %c0_83, %c0_84] : memref<2x32x32xbf16, #tpu.memory_space<vmem>>, vector<1x32x32xbf16>
    %313 = vector.shape_cast %312 : vector<1x32x32xbf16> to vector<32x32xbf16>
    %cst_85 = arith.constant dense<0.000000e+00> : vector<16x32xf32>
    %314 = tpu.matmul %311, %313, %cst_85 {dimension_numbers = #tpu.dot_dimension_numbers<[1], [0], [0], [1], [0, 0, 1, 1], [], []>} : vector<16x32xbf16>, vector<32x32xbf16>, vector<16x32xf32> -> vector<16x32xf32>
    %c1_86 = arith.constant 1 : index
    %c0_87 = arith.constant 0 : index
    %c0_88 = arith.constant 0 : index
    %315 = vector.load %arg7[%c1_86, %c0_87, %c0_88] : memref<2x1x32xf32, #tpu.memory_space<vmem>>, vector<1x1x32xf32>
    %316 = vector.shape_cast %315 : vector<1x1x32xf32> to vector<1x32xf32>
    %317 = vector.broadcast %316 : vector<1x32xf32> to vector<16x32xf32>
    %318 = arith.addf %314, %317 : vector<16x32xf32>
    %319 = arith.addf %213, %318 : vector<16x32xf32>
    %c1_89 = arith.constant 1 : index
    %c0_90 = arith.constant 0 : index
    %c0_91 = arith.constant 0 : index
    %320 = vector.load %arg8[%c1_89, %c0_90, %c0_91] : memref<2x1x32xf32, #tpu.memory_space<vmem>>, vector<1x1x32xf32>
    %321 = vector.shape_cast %320 : vector<1x1x32xf32> to vector<1x32xf32>
    %c1_92 = arith.constant 1 : index
    %c0_93 = arith.constant 0 : index
    %c0_94 = arith.constant 0 : index
    %322 = vector.load %arg9[%c1_92, %c0_93, %c0_94] : memref<2x1x32xf32, #tpu.memory_space<vmem>>, vector<1x1x32xf32>
    %323 = vector.shape_cast %322 : vector<1x1x32xf32> to vector<1x32xf32>
    %cst_95 = arith.constant dense<0.000000e+00> : vector<16xf32>
    %324 = vector.multi_reduction <add>, %319, %cst_95 [1] : vector<16x32xf32> to vector<16xf32>
    %325 = vector.shape_cast %324 : vector<16xf32> to vector<16x1xf32>
    %cst_96 = arith.constant 3.200000e+01 : f32
    %326 = vector.broadcast %cst_96 : f32 to vector<16x1xf32>
    %327 = arith.divf %325, %326 : vector<16x1xf32>
    %328 = vector.broadcast %327 : vector<16x1xf32> to vector<16x32xf32>
    %329 = arith.subf %319, %328 : vector<16x32xf32>
    %330 = arith.mulf %329, %329 : vector<16x32xf32>
    %cst_97 = arith.constant dense<0.000000e+00> : vector<16xf32>
    %331 = vector.multi_reduction <add>, %330, %cst_97 [1] : vector<16x32xf32> to vector<16xf32>
    %332 = vector.shape_cast %331 : vector<16xf32> to vector<16x1xf32>
    %cst_98 = arith.constant 3.200000e+01 : f32
    %333 = vector.broadcast %cst_98 : f32 to vector<16x1xf32>
    %334 = arith.divf %332, %333 : vector<16x1xf32>
    %335 = vector.broadcast %327 : vector<16x1xf32> to vector<16x32xf32>
    %336 = arith.subf %319, %335 : vector<16x32xf32>
    %cst_99 = arith.constant 9.99999996E-13 : f32
    %337 = vector.broadcast %cst_99 : f32 to vector<16x1xf32>
    %338 = arith.addf %334, %337 : vector<16x1xf32>
    %339 = math.rsqrt %338 : vector<16x1xf32>
    %340 = vector.broadcast %339 : vector<16x1xf32> to vector<16x32xf32>
    %341 = arith.mulf %336, %340 : vector<16x32xf32>
    %342 = vector.broadcast %321 : vector<1x32xf32> to vector<16x32xf32>
    %343 = arith.mulf %341, %342 : vector<16x32xf32>
    %344 = vector.broadcast %323 : vector<1x32xf32> to vector<16x32xf32>
    %345 = arith.addf %343, %344 : vector<16x32xf32>
    %346 = arith.truncf %345 : vector<16x32xf32> to vector<16x32xbf16>
    %c1_100 = arith.constant 1 : index
    %c0_101 = arith.constant 0 : index
    %c0_102 = arith.constant 0 : index
    %347 = vector.load %arg10[%c1_100, %c0_101, %c0_102] : memref<2x32x64xbf16, #tpu.memory_space<vmem>>, vector<1x32x64xbf16>
    %348 = vector.shape_cast %347 : vector<1x32x64xbf16> to vector<32x64xbf16>
    %cst_103 = arith.constant dense<0.000000e+00> : vector<16x64xf32>
    %349 = tpu.matmul %346, %348, %cst_103 {dimension_numbers = #tpu.dot_dimension_numbers<[1], [0], [0], [1], [0, 0, 1, 1], [], []>} : vector<16x32xbf16>, vector<32x64xbf16>, vector<16x64xf32> -> vector<16x64xf32>
    %c1_104 = arith.constant 1 : index
    %c0_105 = arith.constant 0 : index
    %c0_106 = arith.constant 0 : index
    %350 = vector.load %arg11[%c1_104, %c0_105, %c0_106] : memref<2x1x64xf32, #tpu.memory_space<vmem>>, vector<1x1x64xf32>
    %351 = vector.shape_cast %350 : vector<1x1x64xf32> to vector<1x64xf32>
    %352 = vector.broadcast %351 : vector<1x64xf32> to vector<16x64xf32>
    %353 = arith.addf %349, %352 : vector<16x64xf32>
    %354 = arith.mulf %353, %353 : vector<16x64xf32>
    %355 = arith.mulf %353, %354 : vector<16x64xf32>
    %cst_107 = arith.constant 4.471500e-02 : f32
    %356 = vector.broadcast %cst_107 : f32 to vector<16x64xf32>
    %357 = arith.mulf %356, %355 : vector<16x64xf32>
    %358 = arith.addf %353, %357 : vector<16x64xf32>
    %cst_108 = arith.constant 0.797884583 : f32
    %359 = vector.broadcast %cst_108 : f32 to vector<16x64xf32>
    %360 = arith.mulf %359, %358 : vector<16x64xf32>
    %361 = math.tanh %360 : vector<16x64xf32>
    %cst_109 = arith.constant 1.000000e+00 : f32
    %362 = vector.broadcast %cst_109 : f32 to vector<16x64xf32>
    %363 = arith.addf %362, %361 : vector<16x64xf32>
    %cst_110 = arith.constant 5.000000e-01 : f32
    %364 = vector.broadcast %cst_110 : f32 to vector<16x64xf32>
    %365 = arith.mulf %364, %363 : vector<16x64xf32>
    %366 = arith.mulf %353, %365 : vector<16x64xf32>
    %367 = arith.truncf %366 : vector<16x64xf32> to vector<16x64xbf16>
    %c1_111 = arith.constant 1 : index
    %c0_112 = arith.constant 0 : index
    %c0_113 = arith.constant 0 : index
    %368 = vector.load %arg12[%c1_111, %c0_112, %c0_113] : memref<2x64x32xbf16, #tpu.memory_space<vmem>>, vector<1x64x32xbf16>
    %369 = vector.shape_cast %368 : vector<1x64x32xbf16> to vector<64x32xbf16>
    %cst_114 = arith.constant dense<0.000000e+00> : vector<16x32xf32>
    %370 = tpu.matmul %367, %369, %cst_114 {dimension_numbers = #tpu.dot_dimension_numbers<[1], [0], [0], [1], [0, 0, 1, 1], [], []>} : vector<16x64xbf16>, vector<64x32xbf16>, vector<16x32xf32> -> vector<16x32xf32>
    %c1_115 = arith.constant 1 : index
    %c0_116 = arith.constant 0 : index
    %c0_117 = arith.constant 0 : index
    %371 = vector.load %arg13[%c1_115, %c0_116, %c0_117] : memref<2x1x32xf32, #tpu.memory_space<vmem>>, vector<1x1x32xf32>
    %372 = vector.shape_cast %371 : vector<1x1x32xf32> to vector<1x32xf32>
    %373 = vector.broadcast %372 : vector<1x32xf32> to vector<16x32xf32>
    %374 = arith.addf %370, %373 : vector<16x32xf32>
    %375 = arith.addf %345, %374 : vector<16x32xf32>
    %c1_118 = arith.constant 1 : index
    %c0_119 = arith.constant 0 : index
    %c0_120 = arith.constant 0 : index
    %376 = vector.load %arg14[%c1_118, %c0_119, %c0_120] : memref<2x1x32xf32, #tpu.memory_space<vmem>>, vector<1x1x32xf32>
    %377 = vector.shape_cast %376 : vector<1x1x32xf32> to vector<1x32xf32>
    %c1_121 = arith.constant 1 : index
    %c0_122 = arith.constant 0 : index
    %c0_123 = arith.constant 0 : index
    %378 = vector.load %arg15[%c1_121, %c0_122, %c0_123] : memref<2x1x32xf32, #tpu.memory_space<vmem>>, vector<1x1x32xf32>
    %379 = vector.shape_cast %378 : vector<1x1x32xf32> to vector<1x32xf32>
    %cst_124 = arith.constant dense<0.000000e+00> : vector<16xf32>
    %380 = vector.multi_reduction <add>, %375, %cst_124 [1] : vector<16x32xf32> to vector<16xf32>
    %381 = vector.shape_cast %380 : vector<16xf32> to vector<16x1xf32>
    %cst_125 = arith.constant 3.200000e+01 : f32
    %382 = vector.broadcast %cst_125 : f32 to vector<16x1xf32>
    %383 = arith.divf %381, %382 : vector<16x1xf32>
    %384 = vector.broadcast %383 : vector<16x1xf32> to vector<16x32xf32>
    %385 = arith.subf %375, %384 : vector<16x32xf32>
    %386 = arith.mulf %385, %385 : vector<16x32xf32>
    %cst_126 = arith.constant dense<0.000000e+00> : vector<16xf32>
    %387 = vector.multi_reduction <add>, %386, %cst_126 [1] : vector<16x32xf32> to vector<16xf32>
    %388 = vector.shape_cast %387 : vector<16xf32> to vector<16x1xf32>
    %cst_127 = arith.constant 3.200000e+01 : f32
    %389 = vector.broadcast %cst_127 : f32 to vector<16x1xf32>
    %390 = arith.divf %388, %389 : vector<16x1xf32>
    %391 = vector.broadcast %383 : vector<16x1xf32> to vector<16x32xf32>
    %392 = arith.subf %375, %391 : vector<16x32xf32>
    %cst_128 = arith.constant 9.99999996E-13 : f32
    %393 = vector.broadcast %cst_128 : f32 to vector<16x1xf32>
    %394 = arith.addf %390, %393 : vector<16x1xf32>
    %395 = math.rsqrt %394 : vector<16x1xf32>
    %396 = vector.broadcast %395 : vector<16x1xf32> to vector<16x32xf32>
    %397 = arith.mulf %392, %396 : vector<16x32xf32>
    %398 = vector.broadcast %377 : vector<1x32xf32> to vector<16x32xf32>
    %399 = arith.mulf %397, %398 : vector<16x32xf32>
    %400 = vector.broadcast %379 : vector<1x32xf32> to vector<16x32xf32>
    %401 = arith.addf %399, %400 : vector<16x32xf32>
    %402 = vector.extract_strided_slice %401 {offsets = [0, 0], sizes = [1, 32], strides = [1, 1]} : vector<16x32xf32> to vector<1x32xf32>
    %403 = vector.extract_strided_slice %401 {offsets = [8, 0], sizes = [1, 32], strides = [1, 1]} : vector<16x32xf32> to vector<1x32xf32>
    %404 = tpu.concatenate %402, %403 in 0 : vector<1x32xf32>, vector<1x32xf32> -> vector<2x32xf32>
    %c0_129 = arith.constant 0 : index
    %c0_130 = arith.constant 0 : index
    %405 = vector.load %arg16[%c0_129, %c0_130] : memref<2x32xf32, #tpu.memory_space<vmem>>, vector<2x32xf32>
    tpu.vector_store %arg16[%c0_129, %c0_130], %404 {strides = array<i32>} : memref<2x32xf32, #tpu.memory_space<vmem>>, vector<2x32xf32>,
    return
  }
}

</mosaic_0001>

<llo_original>
// kernel: bert_dot_dualfusion_forward.1
$region0: #{bert_dot_dualfusion_forward.1}
  #allocation0 [shape = 'u32[]', space=smem, size = 0x4, offset = 0x4, fixed_abs, tag = 'smem constant byte address 0x4 - core index']
  #allocation1 [shape = 'u32[72,128]{1,0:T(1,128)}', space=vmem, size = 0x9000, scoped, tag = 'internal scratch']
  %s0 = inlined_call_operand.vmem [shape: f32[16,32], index: 0, kind: input, shape index: {}]
  %s1 = inlined_call_operand.vmem [shape: f32[8,1,8], index: 1, kind: input, shape index: {}]
  %s2 = inlined_call_operand.vmem [shape: f32[1,32], index: 2, kind: input, shape index: {}]
  %s3 = inlined_call_operand.vmem [shape: f32[1,32], index: 3, kind: input, shape index: {}]
  %s4 = inlined_call_operand.vmem [shape: bf16[2,32,96], index: 4, kind: input, shape index: {}]
  %s5 = inlined_call_operand.vmem [shape: f32[2,1,96], index: 5, kind: input, shape index: {}]
  %s6 = inlined_call_operand.vmem [shape: bf16[2,32,32], index: 6, kind: input, shape index: {}]
  %s7 = inlined_call_operand.vmem [shape: f32[2,1,32], index: 7, kind: input, shape index: {}]
  %s8 = inlined_call_operand.vmem [shape: f32[2,1,32], index: 8, kind: input, shape index: {}]
  %s9 = inlined_call_operand.vmem [shape: f32[2,1,32], index: 9, kind: input, shape index: {}]
  %s10 = inlined_call_operand.vmem [shape: bf16[2,32,64], index: 10, kind: input, shape index: {}]
  %s11 = inlined_call_operand.vmem [shape: f32[2,1,64], index: 11, kind: input, shape index: {}]
  %s12 = inlined_call_operand.vmem [shape: bf16[2,64,32], index: 12, kind: input, shape index: {}]
  %s13 = inlined_call_operand.vmem [shape: f32[2,1,32], index: 13, kind: input, shape index: {}]
  %s14 = inlined_call_operand.vmem [shape: f32[2,1,32], index: 14, kind: input, shape index: {}]
  %s15 = inlined_call_operand.vmem [shape: f32[2,1,32], index: 15, kind: input, shape index: {}]
  %s16 = inlined_call_operand.hbm [shape: f32[2,32], index: 16, kind: output, shape index: {}]
  %s17 = sld [smem:[#allocation0]]
  $region74: #{bert_dot_dualfusion_forward.1} parent=0
    _
  %s19 = ssub.s32 1, %s17
  %s20 = scalar_select 0, %s19, %s17
  $region1: #{bert_dot_dualfusion_forward.1} parent=0
    #allocation2 [shape = 'u8[1024]{0}', space=vmem, size = 0x400, scoped, tag = 'output window, operand 0, single buffered']
    #allocation3 [shape = 's32[1]{0}', space=sflag, size = 0x4, scoped, tag = 'scoped memory for bert_dot_dualfusion_forward.1']
    %21 = vsyncpa [#allocation3], 0
    // Predicated region
    $region2: #{bert_dot_dualfusion_forward.1} parent=1 // pred_check
      _
    $region3: #{bert_dot_dualfusion_forward.1} parent=1 // pred_check_branch
      %23 = sbr.rel (0) target = $region5
    $region4: #{bert_dot_dualfusion_forward.1} parent=1 // pred_region
      _
    $region5: #{bert_dot_dualfusion_forward.1} parent=1 // pred_fallthru
      _
    // Predicated region
    $region6: #{bert_dot_dualfusion_forward.1} parent=1 // pred_check
      _
    $region7: #{bert_dot_dualfusion_forward.1} parent=1 // pred_check_branch
      %25 = sbr.rel (0) target = $region9
    $region8: #{bert_dot_dualfusion_forward.1} parent=1 // pred_region
      _
    $region9: #{bert_dot_dualfusion_forward.1} parent=1 // pred_fallthru
      _
    // Predicated region
    $region10: #{bert_dot_dualfusion_forward.1} parent=1 // pred_check
      _
    $region11: #{bert_dot_dualfusion_forward.1} parent=1 // pred_check_branch
      %27 = sbr.rel (0) target = $region13
    $region12: #{bert_dot_dualfusion_forward.1} parent=1 // pred_region
      _
    $region13: #{bert_dot_dualfusion_forward.1} parent=1 // pred_fallthru
      _
    // Predicated region
    $region14: #{bert_dot_dualfusion_forward.1} parent=1 // pred_check
      _
    $region15: #{bert_dot_dualfusion_forward.1} parent=1 // pred_check_branch
      %29 = sbr.rel (0) target = $region17
    $region16: #{bert_dot_dualfusion_forward.1} parent=1 // pred_region
      _
    $region17: #{bert_dot_dualfusion_forward.1} parent=1 // pred_fallthru
      _
    // Predicated region
    $region18: #{bert_dot_dualfusion_forward.1} parent=1 // pred_check
      _
    $region19: #{bert_dot_dualfusion_forward.1} parent=1 // pred_check_branch
      %31 = sbr.rel (0) target = $region21
    $region20: #{bert_dot_dualfusion_forward.1} parent=1 // pred_region
      _
    $region21: #{bert_dot_dualfusion_forward.1} parent=1 // pred_fallthru
      _
    // Predicated region
    $region22: #{bert_dot_dualfusion_forward.1} parent=1 // pred_check
      _
    $region23: #{bert_dot_dualfusion_forward.1} parent=1 // pred_check_branch
      %33 = sbr.rel (0) target = $region25
    $region24: #{bert_dot_dualfusion_forward.1} parent=1 // pred_region
      _
    $region25: #{bert_dot_dualfusion_forward.1} parent=1 // pred_fallthru
      _
    // Predicated region
    $region26: #{bert_dot_dualfusion_forward.1} parent=1 // pred_check
      _
    $region27: #{bert_dot_dualfusion_forward.1} parent=1 // pred_check_branch
      %35 = sbr.rel (0) target = $region29
    $region28: #{bert_dot_dualfusion_forward.1} parent=1 // pred_region
      _
    $region29: #{bert_dot_dualfusion_forward.1} parent=1 // pred_fallthru
      _
    // Predicated region
    $region30: #{bert_dot_dualfusion_forward.1} parent=1 // pred_check
      _
    $region31: #{bert_dot_dualfusion_forward.1} parent=1 // pred_check_branch
      %37 = sbr.rel (0) target = $region33
    $region32: #{bert_dot_dualfusion_forward.1} parent=1 // pred_region
      _
    $region33: #{bert_dot_dualfusion_forward.1} parent=1 // pred_fallthru
      _
    // Predicated region
    $region34: #{bert_dot_dualfusion_forward.1} parent=1 // pred_check
      _
    $region35: #{bert_dot_dualfusion_forward.1} parent=1 // pred_check_branch
      %39 = sbr.rel (0) target = $region37
    $region36: #{bert_dot_dualfusion_forward.1} parent=1 // pred_region
      _
    $region37: #{bert_dot_dualfusion_forward.1} parent=1 // pred_fallthru
      _
    // Predicated region
    $region38: #{bert_dot_dualfusion_forward.1} parent=1 // pred_check
      _
    $region39: #{bert_dot_dualfusion_forward.1} parent=1 // pred_check_branch
      %41 = sbr.rel (0) target = $region41
    $region40: #{bert_dot_dualfusion_forward.1} parent=1 // pred_region
      _
    $region41: #{bert_dot_dualfusion_forward.1} parent=1 // pred_fallthru
      _
    // Predicated region
    $region42: #{bert_dot_dualfusion_forward.1} parent=1 // pred_check
      _
    $region43: #{bert_dot_dualfusion_forward.1} parent=1 // pred_check_branch
      %43 = sbr.rel (0) target = $region45
    $region44: #{bert_dot_dualfusion_forward.1} parent=1 // pred_region
      _
    $region45: #{bert_dot_dualfusion_forward.1} parent=1 // pred_fallthru
      _
    // Predicated region
    $region46: #{bert_dot_dualfusion_forward.1} parent=1 // pred_check
      _
    $region47: #{bert_dot_dualfusion_forward.1} parent=1 // pred_check_branch
      %45 = sbr.rel (0) target = $region49
    $region48: #{bert_dot_dualfusion_forward.1} parent=1 // pred_region
      _
    $region49: #{bert_dot_dualfusion_forward.1} parent=1 // pred_fallthru
      _
    // Predicated region
    $region50: #{bert_dot_dualfusion_forward.1} parent=1 // pred_check
      _
    $region51: #{bert_dot_dualfusion_forward.1} parent=1 // pred_check_branch
      %47 = sbr.rel (0) target = $region53
    $region52: #{bert_dot_dualfusion_forward.1} parent=1 // pred_region
      _
    $region53: #{bert_dot_dualfusion_forward.1} parent=1 // pred_fallthru
      _
    // Predicated region
    $region54: #{bert_dot_dualfusion_forward.1} parent=1 // pred_check
      _
    $region55: #{bert_dot_dualfusion_forward.1} parent=1 // pred_check_branch
      %49 = sbr.rel (0) target = $region57
    $region56: #{bert_dot_dualfusion_forward.1} parent=1 // pred_region
      _
    $region57: #{bert_dot_dualfusion_forward.1} parent=1 // pred_fallthru
      _
    // Predicated region
    $region58: #{bert_dot_dualfusion_forward.1} parent=1 // pred_check
      _
    $region59: #{bert_dot_dualfusion_forward.1} parent=1 // pred_check_branch
      %51 = sbr.rel (0) target = $region61
    $region60: #{bert_dot_dualfusion_forward.1} parent=1 // pred_region
      _
    $region61: #{bert_dot_dualfusion_forward.1} parent=1 // pred_fallthru
      _
    // Predicated region
    $region62: #{bert_dot_dualfusion_forward.1} parent=1 // pred_check
      _
    $region63: #{bert_dot_dualfusion_forward.1} parent=1 // pred_check_branch
      %53 = sbr.rel (0) target = $region65
    $region64: #{bert_dot_dualfusion_forward.1} parent=1 // pred_region
      _
    $region65: #{bert_dot_dualfusion_forward.1} parent=1 // pred_fallthru
      _
    %v55 = vld [vmem:[%s0] sm:$0xff]
    %v56 = vld [vmem:[%s0 + $0x8] sm:$0xff]
    %v57 = vld [vmem:[%s2] sm:$0x1]
    %v58 = vld [vmem:[%s3] sm:$0x1]
    %vm59 = vcmask 261120
    %v60 = vsel %vm59, %v55, 0.0
    %61 = vadd.xlane.f32.xlu0 %v60
    %v62 = vpop.xlane.xlu0 %61
    %v63 = vsel %vm59, %v56, 0.0
    %64 = vadd.xlane.f32.xlu0 %v63
    %v65 = vpop.xlane.xlu0 %64
    %v66 = vrcp.pop 32.0
    %v67 = vmul.f32 32.0, %v66
    %v68 = vsub.f32 1.0, %v67
    %v69 = vmul.f32 %v66, %v68
    %v70 = vadd.f32 %v66, %v69
    %vm71 = vweird.f32 %v66
    %v72 = vsel %vm71, %v66, %v70
    %v73 = vmul.f32 %v62, %v72
    %v74 = vmul.f32 %v65, %v72
    %v75 = vsub.f32 %v55, %v73
    %v76 = vsub.f32 %v56, %v74
    %v77 = vmul.f32 %v75, %v75
    %v78 = vmul.f32 %v76, %v76
    %v79 = vsel %vm59, %v77, 0.0
    %80 = vadd.xlane.f32.xlu0 %v79
    %v81 = vpop.xlane.xlu0 %80
    %v82 = vsel %vm59, %v78, 0.0
    %83 = vadd.xlane.f32.xlu0 %v82
    %v84 = vpop.xlane.xlu0 %83
    %v85 = vmul.f32 %v81, %v72
    %v86 = vmul.f32 %v84, %v72
    %v87 = vadd.f32 %v85, 1e-12
    %v88 = vadd.f32 %v86, 1e-12
    %v89 = vrsqrt.pop %v87
    %v90 = vmul.f32 %v89, %v87
    %v91 = vmul.f32 %v90, %v89
    %v92 = vmul.f32 0.5, %v91
    %v93 = vsub.f32 1.5, %v92
    %v94 = vmul.f32 %v89, %v93
    %vm95 = vweird.f32 %v87
    %vm96 = vweird.f32 %v89
    %vm97 = vmor %vm95, %vm96
    %v98 = vsel %vm97, %v89, %v94
    %v99 = vrsqrt.pop %v88
    %v100 = vmul.f32 %v99, %v88
    %v101 = vmul.f32 %v100, %v99
    %v102 = vmul.f32 0.5, %v101
    %v103 = vsub.f32 1.5, %v102
    %v104 = vmul.f32 %v99, %v103
    %vm105 = vweird.f32 %v88
    %vm106 = vweird.f32 %v99
    %vm107 = vmor %vm105, %vm106
    %v108 = vsel %vm107, %v99, %v104
    %v109 = vmul.f32 %v75, %v98
    %v110 = vmul.f32 %v76, %v108
    %v112 = vperm.slane %v57, 0
    %v114 = vmul.f32 %v109, %v112
    %v115 = vmul.f32 %v110, %v112
    %v117 = vperm.slane %v58, 0
    %v119 = vadd.f32 %v114, %v117
    %v120 = vadd.f32 %v115, %v117
    %v121 = vld [vmem:[%s1] sm:$0x1]
    %v122 = vld [vmem:[%s1 + $0x1] sm:$0x1]
    %v123 = vld [vmem:[%s1 + $0x2] sm:$0x1]
    %v124 = vld [vmem:[%s1 + $0x3] sm:$0x1]
    %v125 = vld [vmem:[%s1 + $0x4] sm:$0x1]
    %v126 = vld [vmem:[%s1 + $0x5] sm:$0x1]
    %v127 = vld [vmem:[%s1 + $0x6] sm:$0x1]
    %v128 = vld [vmem:[%s1 + $0x7] sm:$0x1]
    %v129 = vpack.c.bf16 %v120, %v119
    %v130 = vld [vmem:[%s4] sm:$0xf]
    %v131 = vld [vmem:[%s4 + $0x4] sm:$0xf]
    %v132 = vld [vmem:[%s4 + $0x8] sm:$0xf]
    %v133 = vld [vmem:[%s4 + $0xc] sm:$0xf]
    %v134 = vld [vmem:[%s5] sm:$0x1]
    %v136 = vperm.slane %v134, 0
    %v142 = vunpack.c.l.b16 %v130
    %v143 = vunpack.c.l.b16 %v131
    %v144 = vunpack.c.l.b16 %v132
    %v145 = vunpack.c.l.b16 %v133
    %v146 = vpack.c.b16 %v143, %v142
    %v147 = vpack.c.b16 %v145, %v144
    %v151 = vsel %vm59, %v129, 0
    %153 = vmatpush.bf16.msra.mxu0 0
    %154 = vmatpush.bf16.msra.mxu0 0
    %155 = vmatpush.bf16.msra.mxu0 0
    %156 = vmatpush.bf16.msra.mxu0 0
    %157 = vmatpush.bf16.msra.mxu0 0
    %158 = vmatpush.bf16.msra.mxu0 0
    %159 = vmatpush.bf16.msra.mxu0 %v147
    %160 = vmatpush.bf16.msra.mxu0 %v146
    %161 = vmatmul.bf16.gmra.mxu0 %v151
    %v162 = vpop.f32.mrf.mxu0
    %v163 = vadd.f32 %v136, %v162
    %v164 = vpop.f32.mrf.mxu0
    %v165 = vadd.f32 %v136, %v164
    %166 = vdwg.mxu0
    %168 = vrot.lane.b32.xlu0 %v163, 120
    %v169 = vpop.permute.xlu0 %168
    %170 = vrot.lane.b32.xlu0 %v163, 112
    %v171 = vpop.permute.xlu0 %170
    %172 = vrot.lane.b32.xlu0 %v163, 104
    %v173 = vpop.permute.xlu0 %172
    %175 = vrot.lane.b32.xlu0 %v165, 120
    %v176 = vpop.permute.xlu0 %175
    %177 = vrot.lane.b32.xlu0 %v165, 112
    %v178 = vpop.permute.xlu0 %177
    %179 = vrot.lane.b32.xlu0 %v165, 104
    %v180 = vpop.permute.xlu0 %179
    %181 = vrot.lane.b32.xlu0 %v163, 96
    %v182 = vpop.permute.xlu0 %181
    %vm183 = vcmask 64512
    %v184 = vsel %vm183, %v163, 0
    %v186 = vsel %vm183, %v182, 0
    %188 = vmatpush.xpose.msra.mxu0 0.0
    %189 = vmatpush.xpose.msra.mxu0 0.0
    %190 = vmatpush.xpose.msra.mxu0 0.0
    %191 = vmatpush.xpose.msra.mxu0 0.0
    %192 = vmatpush.xpose.msra.mxu0 0.0
    %193 = vmatpush.xpose.msra.mxu0 0.0
    %194 = vmatpush.xpose.msra.mxu0 0.0
    %195 = vmatpush.xpose.msra.mxu0 0.0
    %196 = vmatpush.xpose.msra.mxu0 0.0
    %197 = vmatpush.xpose.msra.mxu0 0.0
    %198 = vmatpush.xpose.msra.mxu0 0.0
    %199 = vmatpush.xpose.msra.mxu0 0.0
    %200 = vmatpush.xpose.msra.mxu0 0.0
    %201 = vmatpush.xpose.msra.mxu0 0.0
    %202 = vmatpush.xpose.msra.mxu0 0.0
    %203 = vmatpush.xpose.msra.mxu0 %v186
    %204 = vmatmul.f32.gmra.mxu0 %v184
    %v205 = vpop.f32.mrf.mxu0
    %v206 = vadd.f32 0.0, %v205
    %207 = vdwg.mxu0
    %208 = vrot.lane.b32.xlu0 %v169, 96
    %v209 = vpop.permute.xlu0 %208
    %v210 = vsel %vm183, %v169, 0
    %v212 = vsel %vm183, %v209, 0
    %214 = vmatpush.xpose.msra.mxu0 0.0
    %215 = vmatpush.xpose.msra.mxu0 0.0
    %216 = vmatpush.xpose.msra.mxu0 0.0
    %217 = vmatpush.xpose.msra.mxu0 0.0
    %218 = vmatpush.xpose.msra.mxu0 0.0
    %219 = vmatpush.xpose.msra.mxu0 0.0
    %220 = vmatpush.xpose.msra.mxu0 0.0
    %221 = vmatpush.xpose.msra.mxu0 0.0
    %222 = vmatpush.xpose.msra.mxu0 0.0
    %223 = vmatpush.xpose.msra.mxu0 0.0
    %224 = vmatpush.xpose.msra.mxu0 0.0
    %225 = vmatpush.xpose.msra.mxu0 0.0
    %226 = vmatpush.xpose.msra.mxu0 0.0
    %227 = vmatpush.xpose.msra.mxu0 0.0
    %228 = vmatpush.xpose.msra.mxu0 0.0
    %229 = vmatpush.xpose.msra.mxu0 %v212
    %230 = vmatmul.f32.gmra.mxu0 %v210
    %v231 = vpop.f32.mrf.mxu0
    %v232 = vadd.f32 0.0, %v231
    %233 = vdwg.mxu0
    %234 = vrot.lane.b32.xlu0 %v171, 96
    %v235 = vpop.permute.xlu0 %234
    %v236 = vsel %vm183, %v171, 0
    %v238 = vsel %vm183, %v235, 0
    %240 = vmatpush.xpose.msra.mxu0 0.0
    %241 = vmatpush.xpose.msra.mxu0 0.0
    %242 = vmatpush.xpose.msra.mxu0 0.0
    %243 = vmatpush.xpose.msra.mxu0 0.0
    %244 = vmatpush.xpose.msra.mxu0 0.0
    %245 = vmatpush.xpose.msra.mxu0 0.0
    %246 = vmatpush.xpose.msra.mxu0 0.0
    %247 = vmatpush.xpose.msra.mxu0 0.0
    %248 = vmatpush.xpose.msra.mxu0 0.0
    %249 = vmatpush.xpose.msra.mxu0 0.0
    %250 = vmatpush.xpose.msra.mxu0 0.0
    %251 = vmatpush.xpose.msra.mxu0 0.0
    %252 = vmatpush.xpose.msra.mxu0 0.0
    %253 = vmatpush.xpose.msra.mxu0 0.0
    %254 = vmatpush.xpose.msra.mxu0 0.0
    %255 = vmatpush.xpose.msra.mxu0 %v238
    %256 = vmatmul.f32.gmra.mxu0 %v236
    %v257 = vpop.f32.mrf.mxu0
    %v258 = vadd.f32 0.0, %v257
    %259 = vdwg.mxu0
    %260 = vrot.lane.b32.xlu0 %v173, 96
    %v261 = vpop.permute.xlu0 %260
    %v262 = vsel %vm183, %v173, 0
    %v264 = vsel %vm183, %v261, 0
    %266 = vmatpush.xpose.msra.mxu0 0.0
    %267 = vmatpush.xpose.msra.mxu0 0.0
    %268 = vmatpush.xpose.msra.mxu0 0.0
    %269 = vmatpush.xpose.msra.mxu0 0.0
    %270 = vmatpush.xpose.msra.mxu0 0.0
    %271 = vmatpush.xpose.msra.mxu0 0.0
    %272 = vmatpush.xpose.msra.mxu0 0.0
    %273 = vmatpush.xpose.msra.mxu0 0.0
    %274 = vmatpush.xpose.msra.mxu0 0.0
    %275 = vmatpush.xpose.msra.mxu0 0.0
    %276 = vmatpush.xpose.msra.mxu0 0.0
    %277 = vmatpush.xpose.msra.mxu0 0.0
    %278 = vmatpush.xpose.msra.mxu0 0.0
    %279 = vmatpush.xpose.msra.mxu0 0.0
    %280 = vmatpush.xpose.msra.mxu0 0.0
    %281 = vmatpush.xpose.msra.mxu0 %v264
    %282 = vmatmul.f32.gmra.mxu0 %v262
    %v283 = vpop.f32.mrf.mxu0
    %v284 = vadd.f32 0.0, %v283
    %285 = vdwg.mxu0
    %286 = vrot.lane.b32.xlu0 %v165, 96
    %v287 = vpop.permute.xlu0 %286
    %v288 = vsel %vm183, %v165, 0
    %v290 = vsel %vm183, %v287, 0
    %292 = vmatpush.xpose.msra.mxu0 0.0
    %293 = vmatpush.xpose.msra.mxu0 0.0
    %294 = vmatpush.xpose.msra.mxu0 0.0
    %295 = vmatpush.xpose.msra.mxu0 0.0
    %296 = vmatpush.xpose.msra.mxu0 0.0
    %297 = vmatpush.xpose.msra.mxu0 0.0
    %298 = vmatpush.xpose.msra.mxu0 0.0
    %299 = vmatpush.xpose.msra.mxu0 0.0
    %300 = vmatpush.xpose.msra.mxu0 0.0
    %301 = vmatpush.xpose.msra.mxu0 0.0
    %302 = vmatpush.xpose.msra.mxu0 0.0
    %303 = vmatpush.xpose.msra.mxu0 0.0
    %304 = vmatpush.xpose.msra.mxu0 0.0
    %305 = vmatpush.xpose.msra.mxu0 0.0
    %306 = vmatpush.xpose.msra.mxu0 0.0
    %307 = vmatpush.xpose.msra.mxu0 %v290
    %308 = vmatmul.f32.gmra.mxu0 %v288
    %v309 = vpop.f32.mrf.mxu0
    %v310 = vadd.f32 0.0, %v309
    %311 = vdwg.mxu0
    %312 = vrot.lane.b32.xlu0 %v176, 96
    %v313 = vpop.permute.xlu0 %312
    %v314 = vsel %vm183, %v176, 0
    %v316 = vsel %vm183, %v313, 0
    %318 = vmatpush.xpose.msra.mxu0 0.0
    %319 = vmatpush.xpose.msra.mxu0 0.0
    %320 = vmatpush.xpose.msra.mxu0 0.0
    %321 = vmatpush.xpose.msra.mxu0 0.0
    %322 = vmatpush.xpose.msra.mxu0 0.0
    %323 = vmatpush.xpose.msra.mxu0 0.0
    %324 = vmatpush.xpose.msra.mxu0 0.0
    %325 = vmatpush.xpose.msra.mxu0 0.0
    %326 = vmatpush.xpose.msra.mxu0 0.0
    %327 = vmatpush.xpose.msra.mxu0 0.0
    %328 = vmatpush.xpose.msra.mxu0 0.0
    %329 = vmatpush.xpose.msra.mxu0 0.0
    %330 = vmatpush.xpose.msra.mxu0 0.0
    %331 = vmatpush.xpose.msra.mxu0 0.0
    %332 = vmatpush.xpose.msra.mxu0 0.0
    %333 = vmatpush.xpose.msra.mxu0 %v316
    %334 = vmatmul.f32.gmra.mxu0 %v314
    %v335 = vpop.f32.mrf.mxu0
    %v336 = vadd.f32 0.0, %v335
    %337 = vdwg.mxu0
    %338 = vrot.lane.b32.xlu0 %v178, 96
    %v339 = vpop.permute.xlu0 %338
    %v340 = vsel %vm183, %v178, 0
    %v342 = vsel %vm183, %v339, 0
    %344 = vmatpush.xpose.msra.mxu0 0.0
    %345 = vmatpush.xpose.msra.mxu0 0.0
    %346 = vmatpush.xpose.msra.mxu0 0.0
    %347 = vmatpush.xpose.msra.mxu0 0.0
    %348 = vmatpush.xpose.msra.mxu0 0.0
    %349 = vmatpush.xpose.msra.mxu0 0.0
    %350 = vmatpush.xpose.msra.mxu0 0.0
    %351 = vmatpush.xpose.msra.mxu0 0.0
    %352 = vmatpush.xpose.msra.mxu0 0.0
    %353 = vmatpush.xpose.msra.mxu0 0.0
    %354 = vmatpush.xpose.msra.mxu0 0.0
    %355 = vmatpush.xpose.msra.mxu0 0.0
    %356 = vmatpush.xpose.msra.mxu0 0.0
    %357 = vmatpush.xpose.msra.mxu0 0.0
    %358 = vmatpush.xpose.msra.mxu0 0.0
    %359 = vmatpush.xpose.msra.mxu0 %v342
    %360 = vmatmul.f32.gmra.mxu0 %v340
    %v361 = vpop.f32.mrf.mxu0
    %v362 = vadd.f32 0.0, %v361
    %363 = vdwg.mxu0
    %364 = vrot.lane.b32.xlu0 %v180, 96
    %v365 = vpop.permute.xlu0 %364
    %v366 = vsel %vm183, %v180, 0
    %v368 = vsel %vm183, %v365, 0
    %370 = vmatpush.xpose.msra.mxu0 0.0
    %371 = vmatpush.xpose.msra.mxu0 0.0
    %372 = vmatpush.xpose.msra.mxu0 0.0
    %373 = vmatpush.xpose.msra.mxu0 0.0
    %374 = vmatpush.xpose.msra.mxu0 0.0
    %375 = vmatpush.xpose.msra.mxu0 0.0
    %376 = vmatpush.xpose.msra.mxu0 0.0
    %377 = vmatpush.xpose.msra.mxu0 0.0
    %378 = vmatpush.xpose.msra.mxu0 0.0
    %379 = vmatpush.xpose.msra.mxu0 0.0
    %380 = vmatpush.xpose.msra.mxu0 0.0
    %381 = vmatpush.xpose.msra.mxu0 0.0
    %382 = vmatpush.xpose.msra.mxu0 0.0
    %383 = vmatpush.xpose.msra.mxu0 0.0
    %384 = vmatpush.xpose.msra.mxu0 0.0
    %385 = vmatpush.xpose.msra.mxu0 %v368
    %386 = vmatmul.f32.gmra.mxu0 %v366
    %v387 = vpop.f32.mrf.mxu0
    %v388 = vadd.f32 0.0, %v387
    %389 = vdwg.mxu0
    %v390 = vmul.f32 %v206, 0.35355338
    %v391 = vmul.f32 %v232, 0.35355338
    %v392 = vmul.f32 %v258, 0.35355338
    %v393 = vmul.f32 %v284, 0.35355338
    %v394 = vmul.f32 %v310, 0.35355338
    %v395 = vmul.f32 %v336, 0.35355338
    %v396 = vmul.f32 %v362, 0.35355338
    %v397 = vmul.f32 %v388, 0.35355338
    %v406 = vperm.slane %v121, 0
    %v407 = vperm.slane %v122, 0
    %v408 = vperm.slane %v123, 0
    %v409 = vperm.slane %v124, 0
    %v410 = vperm.slane %v125, 0
    %v411 = vperm.slane %v126, 0
    %v412 = vperm.slane %v127, 0
    %v413 = vperm.slane %v128, 0
    %v422 = vadd.f32 %v390, %v406
    %v423 = vadd.f32 %v391, %v407
    %v424 = vadd.f32 %v392, %v408
    %v425 = vadd.f32 %v393, %v409
    %v426 = vadd.f32 %v394, %v410
    %v427 = vadd.f32 %v395, %v411
    %v428 = vadd.f32 %v396, %v412
    %v429 = vadd.f32 %v397, %v413
    %v430 = vsel %vm183, %v422, -inf
    %431 = vmax.xlane.f32.xlu0 %v430
    %v432 = vpop.xlane.xlu0 %431
    %v433 = vsel %vm183, %v423, -inf
    %434 = vmax.xlane.f32.xlu0 %v433
    %v435 = vpop.xlane.xlu0 %434
    %v436 = vsel %vm183, %v424, -inf
    %437 = vmax.xlane.f32.xlu0 %v436
    %v438 = vpop.xlane.xlu0 %437
    %v439 = vsel %vm183, %v425, -inf
    %440 = vmax.xlane.f32.xlu0 %v439
    %v441 = vpop.xlane.xlu0 %440
    %v442 = vsel %vm183, %v426, -inf
    %443 = vmax.xlane.f32.xlu0 %v442
    %v444 = vpop.xlane.xlu0 %443
    %v445 = vsel %vm183, %v427, -inf
    %446 = vmax.xlane.f32.xlu0 %v445
    %v447 = vpop.xlane.xlu0 %446
    %v448 = vsel %vm183, %v428, -inf
    %449 = vmax.xlane.f32.xlu0 %v448
    %v450 = vpop.xlane.xlu0 %449
    %v451 = vsel %vm183, %v429, -inf
    %452 = vmax.xlane.f32.xlu0 %v451
    %v453 = vpop.xlane.xlu0 %452
    %v454 = vsub.f32 %v422, %v432
    %v455 = vsub.f32 %v423, %v435
    %v456 = vsub.f32 %v424, %v438
    %v457 = vsub.f32 %v425, %v441
    %v458 = vsub.f32 %v426, %v444
    %v459 = vsub.f32 %v427, %v447
    %v460 = vsub.f32 %v428, %v450
    %v461 = vsub.f32 %v429, %v453
    %v462 = vmul.f32 %v454, 1.442695
    %v463 = vpow.pop %v462
    %v464 = vmul.f32 %v455, 1.442695
    %v465 = vpow.pop %v464
    %v466 = vmul.f32 %v456, 1.442695
    %v467 = vpow.pop %v466
    %v468 = vmul.f32 %v457, 1.442695
    %v469 = vpow.pop %v468
    %v470 = vmul.f32 %v458, 1.442695
    %v471 = vpow.pop %v470
    %v472 = vmul.f32 %v459, 1.442695
    %v473 = vpow.pop %v472
    %v474 = vmul.f32 %v460, 1.442695
    %v475 = vpow.pop %v474
    %v476 = vmul.f32 %v461, 1.442695
    %v477 = vpow.pop %v476
    %v478 = vsel %vm183, %v463, 0.0
    %479 = vadd.xlane.f32.xlu0 %v478
    %v480 = vpop.xlane.xlu0 %479
    %v481 = vsel %vm183, %v465, 0.0
    %482 = vadd.xlane.f32.xlu0 %v481
    %v483 = vpop.xlane.xlu0 %482
    %v484 = vsel %vm183, %v467, 0.0
    %485 = vadd.xlane.f32.xlu0 %v484
    %v486 = vpop.xlane.xlu0 %485
    %v487 = vsel %vm183, %v469, 0.0
    %488 = vadd.xlane.f32.xlu0 %v487
    %v489 = vpop.xlane.xlu0 %488
    %v490 = vsel %vm183, %v471, 0.0
    %491 = vadd.xlane.f32.xlu0 %v490
    %v492 = vpop.xlane.xlu0 %491
    %v493 = vsel %vm183, %v473, 0.0
    %494 = vadd.xlane.f32.xlu0 %v493
    %v495 = vpop.xlane.xlu0 %494
    %v496 = vsel %vm183, %v475, 0.0
    %497 = vadd.xlane.f32.xlu0 %v496
    %v498 = vpop.xlane.xlu0 %497
    %v499 = vsel %vm183, %v477, 0.0
    %500 = vadd.xlane.f32.xlu0 %v499
    %v501 = vpop.xlane.xlu0 %500
    %v502 = vrcp.pop %v480
    %v503 = vrcp.pop %v483
    %v504 = vrcp.pop %v486
    %v505 = vrcp.pop %v489
    %v506 = vrcp.pop %v492
    %v507 = vrcp.pop %v495
    %v508 = vrcp.pop %v498
    %v509 = vrcp.pop %v501
    %v510 = vmul.f32 %v463, %v502
    %v511 = vmul.f32 %v465, %v503
    %v512 = vmul.f32 %v467, %v504
    %v513 = vmul.f32 %v469, %v505
    %v514 = vmul.f32 %v471, %v506
    %v515 = vmul.f32 %v473, %v507
    %v516 = vmul.f32 %v475, %v508
    %v517 = vmul.f32 %v477, %v509
    %518 = vrot.lane.b32.xlu0 %v163, 64
    %v519 = vpop.permute.xlu0 %518
    %v522 = vsel %vm183, %v510, 0
    %524 = vmatpush.msra.mxu0 0.0
    %525 = vmatpush.msra.mxu0 0.0
    %526 = vmatpush.msra.mxu0 0.0
    %527 = vmatpush.msra.mxu0 0.0
    %528 = vmatpush.msra.mxu0 0.0
    %529 = vmatpush.msra.mxu0 0.0
    %530 = vmatpush.msra.mxu0 0.0
    %531 = vmatpush.msra.mxu0 0.0
    %532 = vmatpush.msra.mxu0 0.0
    %533 = vmatpush.msra.mxu0 0.0
    %534 = vmatpush.msra.mxu0 0.0
    %535 = vmatpush.msra.mxu0 0.0
    %536 = vmatpush.msra.mxu0 0.0
    %537 = vmatpush.msra.mxu0 0.0
    %538 = vmatpush.msra.mxu0 0.0
    %539 = vmatpush.msra.mxu0 %v519
    %540 = vmatmul.f32.gmra.mxu0 %v522
    %v541 = vpop.f32.mrf.mxu0
    %v542 = vadd.f32 0.0, %v541
    %543 = vdwg.mxu0
    %544 = vrot.lane.b32.xlu0 %v169, 64
    %v545 = vpop.permute.xlu0 %544
    %v548 = vsel %vm183, %v511, 0
    %550 = vmatpush.msra.mxu0 0.0
    %551 = vmatpush.msra.mxu0 0.0
    %552 = vmatpush.msra.mxu0 0.0
    %553 = vmatpush.msra.mxu0 0.0
    %554 = vmatpush.msra.mxu0 0.0
    %555 = vmatpush.msra.mxu0 0.0
    %556 = vmatpush.msra.mxu0 0.0
    %557 = vmatpush.msra.mxu0 0.0
    %558 = vmatpush.msra.mxu0 0.0
    %559 = vmatpush.msra.mxu0 0.0
    %560 = vmatpush.msra.mxu0 0.0
    %561 = vmatpush.msra.mxu0 0.0
    %562 = vmatpush.msra.mxu0 0.0
    %563 = vmatpush.msra.mxu0 0.0
    %564 = vmatpush.msra.mxu0 0.0
    %565 = vmatpush.msra.mxu0 %v545
    %566 = vmatmul.f32.gmra.mxu0 %v548
    %v567 = vpop.f32.mrf.mxu0
    %v568 = vadd.f32 0.0, %v567
    %569 = vdwg.mxu0
    %570 = vrot.lane.b32.xlu0 %v171, 64
    %v571 = vpop.permute.xlu0 %570
    %v574 = vsel %vm183, %v512, 0
    %576 = vmatpush.msra.mxu0 0.0
    %577 = vmatpush.msra.mxu0 0.0
    %578 = vmatpush.msra.mxu0 0.0
    %579 = vmatpush.msra.mxu0 0.0
    %580 = vmatpush.msra.mxu0 0.0
    %581 = vmatpush.msra.mxu0 0.0
    %582 = vmatpush.msra.mxu0 0.0
    %583 = vmatpush.msra.mxu0 0.0
    %584 = vmatpush.msra.mxu0 0.0
    %585 = vmatpush.msra.mxu0 0.0
    %586 = vmatpush.msra.mxu0 0.0
    %587 = vmatpush.msra.mxu0 0.0
    %588 = vmatpush.msra.mxu0 0.0
    %589 = vmatpush.msra.mxu0 0.0
    %590 = vmatpush.msra.mxu0 0.0
    %591 = vmatpush.msra.mxu0 %v571
    %592 = vmatmul.f32.gmra.mxu0 %v574
    %v593 = vpop.f32.mrf.mxu0
    %v594 = vadd.f32 0.0, %v593
    %595 = vdwg.mxu0
    %596 = vrot.lane.b32.xlu0 %v173, 64
    %v597 = vpop.permute.xlu0 %596
    %v600 = vsel %vm183, %v513, 0
    %602 = vmatpush.msra.mxu0 0.0
    %603 = vmatpush.msra.mxu0 0.0
    %604 = vmatpush.msra.mxu0 0.0
    %605 = vmatpush.msra.mxu0 0.0
    %606 = vmatpush.msra.mxu0 0.0
    %607 = vmatpush.msra.mxu0 0.0
    %608 = vmatpush.msra.mxu0 0.0
    %609 = vmatpush.msra.mxu0 0.0
    %610 = vmatpush.msra.mxu0 0.0
    %611 = vmatpush.msra.mxu0 0.0
    %612 = vmatpush.msra.mxu0 0.0
    %613 = vmatpush.msra.mxu0 0.0
    %614 = vmatpush.msra.mxu0 0.0
    %615 = vmatpush.msra.mxu0 0.0
    %616 = vmatpush.msra.mxu0 0.0
    %617 = vmatpush.msra.mxu0 %v597
    %618 = vmatmul.f32.gmra.mxu0 %v600
    %v619 = vpop.f32.mrf.mxu0
    %v620 = vadd.f32 0.0, %v619
    %621 = vdwg.mxu0
    %622 = vrot.lane.b32.xlu0 %v165, 64
    %v623 = vpop.permute.xlu0 %622
    %v626 = vsel %vm183, %v514, 0
    %628 = vmatpush.msra.mxu0 0.0
    %629 = vmatpush.msra.mxu0 0.0
    %630 = vmatpush.msra.mxu0 0.0
    %631 = vmatpush.msra.mxu0 0.0
    %632 = vmatpush.msra.mxu0 0.0
    %633 = vmatpush.msra.mxu0 0.0
    %634 = vmatpush.msra.mxu0 0.0
    %635 = vmatpush.msra.mxu0 0.0
    %636 = vmatpush.msra.mxu0 0.0
    %637 = vmatpush.msra.mxu0 0.0
    %638 = vmatpush.msra.mxu0 0.0
    %639 = vmatpush.msra.mxu0 0.0
    %640 = vmatpush.msra.mxu0 0.0
    %641 = vmatpush.msra.mxu0 0.0
    %642 = vmatpush.msra.mxu0 0.0
    %643 = vmatpush.msra.mxu0 %v623
    %644 = vmatmul.f32.gmra.mxu0 %v626
    %v645 = vpop.f32.mrf.mxu0
    %v646 = vadd.f32 0.0, %v645
    %647 = vdwg.mxu0
    %648 = vrot.lane.b32.xlu0 %v176, 64
    %v649 = vpop.permute.xlu0 %648
    %v652 = vsel %vm183, %v515, 0
    %654 = vmatpush.msra.mxu0 0.0
    %655 = vmatpush.msra.mxu0 0.0
    %656 = vmatpush.msra.mxu0 0.0
    %657 = vmatpush.msra.mxu0 0.0
    %658 = vmatpush.msra.mxu0 0.0
    %659 = vmatpush.msra.mxu0 0.0
    %660 = vmatpush.msra.mxu0 0.0
    %661 = vmatpush.msra.mxu0 0.0
    %662 = vmatpush.msra.mxu0 0.0
    %663 = vmatpush.msra.mxu0 0.0
    %664 = vmatpush.msra.mxu0 0.0
    %665 = vmatpush.msra.mxu0 0.0
    %666 = vmatpush.msra.mxu0 0.0
    %667 = vmatpush.msra.mxu0 0.0
    %668 = vmatpush.msra.mxu0 0.0
    %669 = vmatpush.msra.mxu0 %v649
    %670 = vmatmul.f32.gmra.mxu0 %v652
    %v671 = vpop.f32.mrf.mxu0
    %v672 = vadd.f32 0.0, %v671
    %673 = vdwg.mxu0
    %674 = vrot.lane.b32.xlu0 %v178, 64
    %v675 = vpop.permute.xlu0 %674
    %v678 = vsel %vm183, %v516, 0
    %680 = vmatpush.msra.mxu0 0.0
    %681 = vmatpush.msra.mxu0 0.0
    %682 = vmatpush.msra.mxu0 0.0
    %683 = vmatpush.msra.mxu0 0.0
    %684 = vmatpush.msra.mxu0 0.0
    %685 = vmatpush.msra.mxu0 0.0
    %686 = vmatpush.msra.mxu0 0.0
    %687 = vmatpush.msra.mxu0 0.0
    %688 = vmatpush.msra.mxu0 0.0
    %689 = vmatpush.msra.mxu0 0.0
    %690 = vmatpush.msra.mxu0 0.0
    %691 = vmatpush.msra.mxu0 0.0
    %692 = vmatpush.msra.mxu0 0.0
    %693 = vmatpush.msra.mxu0 0.0
    %694 = vmatpush.msra.mxu0 0.0
    %695 = vmatpush.msra.mxu0 %v675
    %696 = vmatmul.f32.gmra.mxu0 %v678
    %v697 = vpop.f32.mrf.mxu0
    %v698 = vadd.f32 0.0, %v697
    %699 = vdwg.mxu0
    %700 = vrot.lane.b32.xlu0 %v180, 64
    %v701 = vpop.permute.xlu0 %700
    %v704 = vsel %vm183, %v517, 0
    %706 = vmatpush.msra.mxu0 0.0
    %707 = vmatpush.msra.mxu0 0.0
    %708 = vmatpush.msra.mxu0 0.0
    %709 = vmatpush.msra.mxu0 0.0
    %710 = vmatpush.msra.mxu0 0.0
    %711 = vmatpush.msra.mxu0 0.0
    %712 = vmatpush.msra.mxu0 0.0
    %713 = vmatpush.msra.mxu0 0.0
    %714 = vmatpush.msra.mxu0 0.0
    %715 = vmatpush.msra.mxu0 0.0
    %716 = vmatpush.msra.mxu0 0.0
    %717 = vmatpush.msra.mxu0 0.0
    %718 = vmatpush.msra.mxu0 0.0
    %719 = vmatpush.msra.mxu0 0.0
    %720 = vmatpush.msra.mxu0 0.0
    %721 = vmatpush.msra.mxu0 %v701
    %722 = vmatmul.f32.gmra.mxu0 %v704
    %v723 = vpop.f32.mrf.mxu0
    %v724 = vadd.f32 0.0, %v723
    %725 = vdwg.mxu0
    %727 = vrot.lane.b32.xlu0 %v568, 8
    %v728 = vpop.permute.xlu0 %727
    %731 = vrot.lane.b32.xlu0 %v594, 16
    %v732 = vpop.permute.xlu0 %731
    %735 = vrot.lane.b32.xlu0 %v620, 24
    %v736 = vpop.permute.xlu0 %735
    %v738 = vsel %vm183, %v542, %v728
    %vm739 = vcmask 130048
    %v740 = vsel %vm739, %v738, %v732
    %vm741 = vcmask 195584
    %v742 = vsel %vm741, %v740, %v736
    %744 = vrot.lane.b32.xlu0 %v672, 8
    %v745 = vpop.permute.xlu0 %744
    %748 = vrot.lane.b32.xlu0 %v698, 16
    %v749 = vpop.permute.xlu0 %748
    %752 = vrot.lane.b32.xlu0 %v724, 24
    %v753 = vpop.permute.xlu0 %752
    %v755 = vsel %vm183, %v646, %v745
    %v756 = vsel %vm739, %v755, %v749
    %v757 = vsel %vm741, %v756, %v753
    %v758 = vpack.c.bf16 %v757, %v742
    %v759 = vld [vmem:[%s6] sm:$0xf]
    %v760 = vld [vmem:[%s6 + $0x4] sm:$0xf]
    %v761 = vld [vmem:[%s6 + $0x8] sm:$0xf]
    %v762 = vld [vmem:[%s6 + $0xc] sm:$0xf]
    %v763 = vld [vmem:[%s7] sm:$0x1]
    %v765 = vperm.slane %v763, 0
    %v771 = vunpack.c.l.b16 %v759
    %v772 = vunpack.c.l.b16 %v760
    %v773 = vunpack.c.l.b16 %v761
    %v774 = vunpack.c.l.b16 %v762
    %v775 = vpack.c.b16 %v772, %v771
    %v776 = vpack.c.b16 %v774, %v773
    %v780 = vsel %vm59, %v758, 0
    %782 = vmatpush.bf16.msra.mxu0 0
    %783 = vmatpush.bf16.msra.mxu0 0
    %784 = vmatpush.bf16.msra.mxu0 0
    %785 = vmatpush.bf16.msra.mxu0 0
    %786 = vmatpush.bf16.msra.mxu0 0
    %787 = vmatpush.bf16.msra.mxu0 0
    %788 = vmatpush.bf16.msra.mxu0 %v776
    %789 = vmatpush.bf16.msra.mxu0 %v775
    %790 = vmatmul.bf16.gmra.mxu0 %v780
    %v791 = vpop.f32.mrf.mxu0
    %v792 = vadd.f32 %v765, %v791
    %v793 = vpop.f32.mrf.mxu0
    %v794 = vadd.f32 %v765, %v793
    %795 = vdwg.mxu0
    %v796 = vadd.f32 %v119, %v792
    %v797 = vadd.f32 %v120, %v794
    %v798 = vld [vmem:[%s8] sm:$0x1]
    %v799 = vld [vmem:[%s9] sm:$0x1]
    %v800 = vsel %vm59, %v796, 0.0
    %801 = vadd.xlane.f32.xlu0 %v800
    %v802 = vpop.xlane.xlu0 %801
    %v803 = vsel %vm59, %v797, 0.0
    %804 = vadd.xlane.f32.xlu0 %v803
    %v805 = vpop.xlane.xlu0 %804
    %v806 = vmul.f32 %v802, %v72
    %v807 = vmul.f32 %v805, %v72
    %v808 = vsub.f32 %v796, %v806
    %v809 = vsub.f32 %v797, %v807
    %v810 = vmul.f32 %v808, %v808
    %v811 = vmul.f32 %v809, %v809
    %v812 = vsel %vm59, %v810, 0.0
    %813 = vadd.xlane.f32.xlu0 %v812
    %v814 = vpop.xlane.xlu0 %813
    %v815 = vsel %vm59, %v811, 0.0
    %816 = vadd.xlane.f32.xlu0 %v815
    %v817 = vpop.xlane.xlu0 %816
    %v818 = vmul.f32 %v814, %v72
    %v819 = vmul.f32 %v817, %v72
    %v820 = vadd.f32 %v818, 1e-12
    %v821 = vadd.f32 %v819, 1e-12
    %v822 = vrsqrt.pop %v820
    %v823 = vmul.f32 %v822, %v820
    %v824 = vmul.f32 %v823, %v822
    %v825 = vmul.f32 0.5, %v824
    %v826 = vsub.f32 1.5, %v825
    %v827 = vmul.f32 %v822, %v826
    %vm828 = vweird.f32 %v820
    %vm829 = vweird.f32 %v822
    %vm830 = vmor %vm828, %vm829
    %v831 = vsel %vm830, %v822, %v827
    %v832 = vrsqrt.pop %v821
    %v833 = vmul.f32 %v832, %v821
    %v834 = vmul.f32 %v833, %v832
    %v835 = vmul.f32 0.5, %v834
    %v836 = vsub.f32 1.5, %v835
    %v837 = vmul.f32 %v832, %v836
    %vm838 = vweird.f32 %v821
    %vm839 = vweird.f32 %v832
    %vm840 = vmor %vm838, %vm839
    %v841 = vsel %vm840, %v832, %v837
    %v842 = vmul.f32 %v808, %v831
    %v843 = vmul.f32 %v809, %v841
    %v845 = vperm.slane %v798, 0
    %v847 = vmul.f32 %v842, %v845
    %v848 = vmul.f32 %v843, %v845
    %v850 = vperm.slane %v799, 0
    %v852 = vadd.f32 %v847, %v850
    %v853 = vadd.f32 %v848, %v850
    %v854 = vpack.c.bf16 %v853, %v852
    %v855 = vld [vmem:[%s10] sm:$0xf]
    %v856 = vld [vmem:[%s10 + $0x4] sm:$0xf]
    %v857 = vld [vmem:[%s10 + $0x8] sm:$0xf]
    %v858 = vld [vmem:[%s10 + $0xc] sm:$0xf]
    %v859 = vld [vmem:[%s11] sm:$0x1]
    %v861 = vperm.slane %v859, 0
    %v867 = vunpack.c.l.b16 %v855
    %v868 = vunpack.c.l.b16 %v856
    %v869 = vunpack.c.l.b16 %v857
    %v870 = vunpack.c.l.b16 %v858
    %v871 = vpack.c.b16 %v868, %v867
    %v872 = vpack.c.b16 %v870, %v869
    %v876 = vsel %vm59, %v854, 0
    %878 = vmatpush.bf16.msra.mxu0 0
    %879 = vmatpush.bf16.msra.mxu0 0
    %880 = vmatpush.bf16.msra.mxu0 0
    %881 = vmatpush.bf16.msra.mxu0 0
    %882 = vmatpush.bf16.msra.mxu0 0
    %883 = vmatpush.bf16.msra.mxu0 0
    %884 = vmatpush.bf16.msra.mxu0 %v872
    %885 = vmatpush.bf16.msra.mxu0 %v871
    %886 = vmatmul.bf16.gmra.mxu0 %v876
    %v887 = vpop.f32.mrf.mxu0
    %v888 = vadd.f32 %v861, %v887
    %v889 = vpop.f32.mrf.mxu0
    %v890 = vadd.f32 %v861, %v889
    %891 = vdwg.mxu0
    %v892 = vmul.f32 %v888, %v888
    %v893 = vmul.f32 %v890, %v890
    %v894 = vmul.f32 %v888, %v892
    %v895 = vmul.f32 %v890, %v893
    %v896 = vmul.f32 %v894, 0.044715
    %v897 = vmul.f32 %v895, 0.044715
    %v898 = vadd.f32 %v888, %v896
    %v899 = vadd.f32 %v890, %v897
    %v900 = vmul.f32 %v898, 0.7978846
    %v901 = vmul.f32 %v899, 0.7978846
    %v902 = vtanh.pop %v900
    %v903 = vtanh.pop %v901
    %v904 = vadd.f32 %v902, 1.0
    %v905 = vadd.f32 %v903, 1.0
    %v906 = vmul.f32 %v904, 0.5
    %v907 = vmul.f32 %v905, 0.5
    %v908 = vmul.f32 %v888, %v906
    %v909 = vmul.f32 %v890, %v907
    %v910 = vpack.c.bf16 %v909, %v908
    %v911 = vld [vmem:[%s12] sm:$0xf]
    %v912 = vld [vmem:[%s12 + $0x4] sm:$0xf]
    %v913 = vld [vmem:[%s12 + $0x8] sm:$0xf]
    %v914 = vld [vmem:[%s12 + $0xc] sm:$0xf]
    %v915 = vld [vmem:[%s12 + $0x10] sm:$0xf]
    %v916 = vld [vmem:[%s12 + $0x14] sm:$0xf]
    %v917 = vld [vmem:[%s12 + $0x18] sm:$0xf]
    %v918 = vld [vmem:[%s12 + $0x1c] sm:$0xf]
    %v919 = vld [vmem:[%s13] sm:$0x1]
    %v921 = vperm.slane %v919, 0
    %v931 = vunpack.c.l.b16 %v911
    %v932 = vunpack.c.l.b16 %v912
    %v933 = vunpack.c.l.b16 %v913
    %v934 = vunpack.c.l.b16 %v914
    %v935 = vunpack.c.l.b16 %v915
    %v936 = vunpack.c.l.b16 %v916
    %v937 = vunpack.c.l.b16 %v917
    %v938 = vunpack.c.l.b16 %v918
    %v939 = vpack.c.b16 %v932, %v931
    %v940 = vpack.c.b16 %v934, %v933
    %v941 = vpack.c.b16 %v936, %v935
    %v942 = vpack.c.b16 %v938, %v937
    %vm947 = vcmask 523264
    %v949 = vsel %vm947, %v910, 0
    %951 = vmatpush.bf16.msra.mxu0 0
    %952 = vmatpush.bf16.msra.mxu0 0
    %953 = vmatpush.bf16.msra.mxu0 0
    %954 = vmatpush.bf16.msra.mxu0 0
    %955 = vmatpush.bf16.msra.mxu0 %v942
    %956 = vmatpush.bf16.msra.mxu0 %v941
    %957 = vmatpush.bf16.msra.mxu0 %v940
    %958 = vmatpush.bf16.msra.mxu0 %v939
    %959 = vmatmul.bf16.gmra.mxu0 %v949
    %v960 = vpop.f32.mrf.mxu0
    %v961 = vadd.f32 %v921, %v960
    %v962 = vpop.f32.mrf.mxu0
    %v963 = vadd.f32 %v921, %v962
    %964 = vdwg.mxu0
    %v965 = vadd.f32 %v852, %v961
    %v966 = vadd.f32 %v853, %v963
    %v967 = vld [vmem:[%s14] sm:$0x1]
    %v968 = vld [vmem:[%s15] sm:$0x1]
    %v969 = vsel %vm59, %v965, 0.0
    %970 = vadd.xlane.f32.xlu0 %v969
    %v971 = vpop.xlane.xlu0 %970
    %v972 = vsel %vm59, %v966, 0.0
    %973 = vadd.xlane.f32.xlu0 %v972
    %v974 = vpop.xlane.xlu0 %973
    %v975 = vmul.f32 %v971, %v72
    %v976 = vmul.f32 %v974, %v72
    %v977 = vsub.f32 %v965, %v975
    %v978 = vsub.f32 %v966, %v976
    %v979 = vmul.f32 %v977, %v977
    %v980 = vmul.f32 %v978, %v978
    %v981 = vsel %vm59, %v979, 0.0
    %982 = vadd.xlane.f32.xlu0 %v981
    %v983 = vpop.xlane.xlu0 %982
    %v984 = vsel %vm59, %v980, 0.0
    %985 = vadd.xlane.f32.xlu0 %v984
    %v986 = vpop.xlane.xlu0 %985
    %v987 = vmul.f32 %v983, %v72
    %v988 = vmul.f32 %v986, %v72
    %v989 = vadd.f32 %v987, 1e-12
    %v990 = vadd.f32 %v988, 1e-12
    %v991 = vrsqrt.pop %v989
    %v992 = vmul.f32 %v991, %v989
    %v993 = vmul.f32 %v992, %v991
    %v994 = vmul.f32 0.5, %v993
    %v995 = vsub.f32 1.5, %v994
    %v996 = vmul.f32 %v991, %v995
    %vm997 = vweird.f32 %v989
    %vm998 = vweird.f32 %v991
    %vm999 = vmor %vm997, %vm998
    %v1000 = vsel %vm999, %v991, %v996
    %v1001 = vrsqrt.pop %v990
    %v1002 = vmul.f32 %v1001, %v990
    %v1003 = vmul.f32 %v1002, %v1001
    %v1004 = vmul.f32 0.5, %v1003
    %v1005 = vsub.f32 1.5, %v1004
    %v1006 = vmul.f32 %v1001, %v1005
    %vm1007 = vweird.f32 %v990
    %vm1008 = vweird.f32 %v1001
    %vm1009 = vmor %vm1007, %vm1008
    %v1010 = vsel %vm1009, %v1001, %v1006
    %v1011 = vmul.f32 %v977, %v1000
    %v1012 = vmul.f32 %v978, %v1010
    %v1014 = vperm.slane %v967, 0
    %v1016 = vmul.f32 %v1011, %v1014
    %v1017 = vmul.f32 %v1012, %v1014
    %v1019 = vperm.slane %v968, 0
    %v1021 = vadd.f32 %v1016, %v1019
    %v1022 = vadd.f32 %v1017, %v1019
    %v1023 = vpack.c.bf16 %v1022, %v1021
    %s1024 = scalar_lea.vmem %s4, 16
    %v1025 = vld [vmem:[%s1024] sm:$0xf]
    %v1026 = vld [vmem:[%s1024 + $0x4] sm:$0xf]
    %v1027 = vld [vmem:[%s1024 + $0x8] sm:$0xf]
    %v1028 = vld [vmem:[%s1024 + $0xc] sm:$0xf]
    %s1029 = scalar_lea.vmem %s5, 1
    %v1030 = vld [vmem:[%s1029] sm:$0x1]
    %v1032 = vperm.slane %v1030, 0
    %v1038 = vunpack.c.l.b16 %v1025
    %v1039 = vunpack.c.l.b16 %v1026
    %v1040 = vunpack.c.l.b16 %v1027
    %v1041 = vunpack.c.l.b16 %v1028
    %v1042 = vpack.c.b16 %v1039, %v1038
    %v1043 = vpack.c.b16 %v1041, %v1040
    %v1047 = vsel %vm59, %v1023, 0
    %1049 = vmatpush.bf16.msra.mxu0 0
    %1050 = vmatpush.bf16.msra.mxu0 0
    %1051 = vmatpush.bf16.msra.mxu0 0
    %1052 = vmatpush.bf16.msra.mxu0 0
    %1053 = vmatpush.bf16.msra.mxu0 0
    %1054 = vmatpush.bf16.msra.mxu0 0
    %1055 = vmatpush.bf16.msra.mxu0 %v1043
    %1056 = vmatpush.bf16.msra.mxu0 %v1042
    %1057 = vmatmul.bf16.gmra.mxu0 %v1047
    %v1058 = vpop.f32.mrf.mxu0
    %v1059 = vadd.f32 %v1032, %v1058
    %v1060 = vpop.f32.mrf.mxu0
    %v1061 = vadd.f32 %v1032, %v1060
    %1062 = vdwg.mxu0
    %1064 = vrot.lane.b32.xlu0 %v1059, 120
    %v1065 = vpop.permute.xlu0 %1064
    %1066 = vrot.lane.b32.xlu0 %v1059, 112
    %v1067 = vpop.permute.xlu0 %1066
    %1068 = vrot.lane.b32.xlu0 %v1059, 104
    %v1069 = vpop.permute.xlu0 %1068
    %1071 = vrot.lane.b32.xlu0 %v1061, 120
    %v1072 = vpop.permute.xlu0 %1071
    %1073 = vrot.lane.b32.xlu0 %v1061, 112
    %v1074 = vpop.permute.xlu0 %1073
    %1075 = vrot.lane.b32.xlu0 %v1061, 104
    %v1076 = vpop.permute.xlu0 %1075
    %1077 = vrot.lane.b32.xlu0 %v1059, 96
    %v1078 = vpop.permute.xlu0 %1077
    %v1079 = vsel %vm183, %v1059, 0
    %v1081 = vsel %vm183, %v1078, 0
    %1083 = vmatpush.xpose.msra.mxu0 0.0
    %1084 = vmatpush.xpose.msra.mxu0 0.0
    %1085 = vmatpush.xpose.msra.mxu0 0.0
    %1086 = vmatpush.xpose.msra.mxu0 0.0
    %1087 = vmatpush.xpose.msra.mxu0 0.0
    %1088 = vmatpush.xpose.msra.mxu0 0.0
    %1089 = vmatpush.xpose.msra.mxu0 0.0
    %1090 = vmatpush.xpose.msra.mxu0 0.0
    %1091 = vmatpush.xpose.msra.mxu0 0.0
    %1092 = vmatpush.xpose.msra.mxu0 0.0
    %1093 = vmatpush.xpose.msra.mxu0 0.0
    %1094 = vmatpush.xpose.msra.mxu0 0.0
    %1095 = vmatpush.xpose.msra.mxu0 0.0
    %1096 = vmatpush.xpose.msra.mxu0 0.0
    %1097 = vmatpush.xpose.msra.mxu0 0.0
    %1098 = vmatpush.xpose.msra.mxu0 %v1081
    %1099 = vmatmul.f32.gmra.mxu0 %v1079
    %v1100 = vpop.f32.mrf.mxu0
    %v1101 = vadd.f32 0.0, %v1100
    %1102 = vdwg.mxu0
    %1103 = vrot.lane.b32.xlu0 %v1065, 96
    %v1104 = vpop.permute.xlu0 %1103
    %v1105 = vsel %vm183, %v1065, 0
    %v1107 = vsel %vm183, %v1104, 0
    %1109 = vmatpush.xpose.msra.mxu0 0.0
    %1110 = vmatpush.xpose.msra.mxu0 0.0
    %1111 = vmatpush.xpose.msra.mxu0 0.0
    %1112 = vmatpush.xpose.msra.mxu0 0.0
    %1113 = vmatpush.xpose.msra.mxu0 0.0
    %1114 = vmatpush.xpose.msra.mxu0 0.0
    %1115 = vmatpush.xpose.msra.mxu0 0.0
    %1116 = vmatpush.xpose.msra.mxu0 0.0
    %1117 = vmatpush.xpose.msra.mxu0 0.0
    %1118 = vmatpush.xpose.msra.mxu0 0.0
    %1119 = vmatpush.xpose.msra.mxu0 0.0
    %1120 = vmatpush.xpose.msra.mxu0 0.0
    %1121 = vmatpush.xpose.msra.mxu0 0.0
    %1122 = vmatpush.xpose.msra.mxu0 0.0
    %1123 = vmatpush.xpose.msra.mxu0 0.0
    %1124 = vmatpush.xpose.msra.mxu0 %v1107
    %1125 = vmatmul.f32.gmra.mxu0 %v1105
    %v1126 = vpop.f32.mrf.mxu0
    %v1127 = vadd.f32 0.0, %v1126
    %1128 = vdwg.mxu0
    %1129 = vrot.lane.b32.xlu0 %v1067, 96
    %v1130 = vpop.permute.xlu0 %1129
    %v1131 = vsel %vm183, %v1067, 0
    %v1133 = vsel %vm183, %v1130, 0
    %1135 = vmatpush.xpose.msra.mxu0 0.0
    %1136 = vmatpush.xpose.msra.mxu0 0.0
    %1137 = vmatpush.xpose.msra.mxu0 0.0
    %1138 = vmatpush.xpose.msra.mxu0 0.0
    %1139 = vmatpush.xpose.msra.mxu0 0.0
    %1140 = vmatpush.xpose.msra.mxu0 0.0
    %1141 = vmatpush.xpose.msra.mxu0 0.0
    %1142 = vmatpush.xpose.msra.mxu0 0.0
    %1143 = vmatpush.xpose.msra.mxu0 0.0
    %1144 = vmatpush.xpose.msra.mxu0 0.0
    %1145 = vmatpush.xpose.msra.mxu0 0.0
    %1146 = vmatpush.xpose.msra.mxu0 0.0
    %1147 = vmatpush.xpose.msra.mxu0 0.0
    %1148 = vmatpush.xpose.msra.mxu0 0.0
    %1149 = vmatpush.xpose.msra.mxu0 0.0
    %1150 = vmatpush.xpose.msra.mxu0 %v1133
    %1151 = vmatmul.f32.gmra.mxu0 %v1131
    %v1152 = vpop.f32.mrf.mxu0
    %v1153 = vadd.f32 0.0, %v1152
    %1154 = vdwg.mxu0
    %1155 = vrot.lane.b32.xlu0 %v1069, 96
    %v1156 = vpop.permute.xlu0 %1155
    %v1157 = vsel %vm183, %v1069, 0
    %v1159 = vsel %vm183, %v1156, 0
    %1161 = vmatpush.xpose.msra.mxu0 0.0
    %1162 = vmatpush.xpose.msra.mxu0 0.0
    %1163 = vmatpush.xpose.msra.mxu0 0.0
    %1164 = vmatpush.xpose.msra.mxu0 0.0
    %1165 = vmatpush.xpose.msra.mxu0 0.0
    %1166 = vmatpush.xpose.msra.mxu0 0.0
    %1167 = vmatpush.xpose.msra.mxu0 0.0
    %1168 = vmatpush.xpose.msra.mxu0 0.0
    %1169 = vmatpush.xpose.msra.mxu0 0.0
    %1170 = vmatpush.xpose.msra.mxu0 0.0
    %1171 = vmatpush.xpose.msra.mxu0 0.0
    %1172 = vmatpush.xpose.msra.mxu0 0.0
    %1173 = vmatpush.xpose.msra.mxu0 0.0
    %1174 = vmatpush.xpose.msra.mxu0 0.0
    %1175 = vmatpush.xpose.msra.mxu0 0.0
    %1176 = vmatpush.xpose.msra.mxu0 %v1159
    %1177 = vmatmul.f32.gmra.mxu0 %v1157
    %v1178 = vpop.f32.mrf.mxu0
    %v1179 = vadd.f32 0.0, %v1178
    %1180 = vdwg.mxu0
    %1181 = vrot.lane.b32.xlu0 %v1061, 96
    %v1182 = vpop.permute.xlu0 %1181
    %v1183 = vsel %vm183, %v1061, 0
    %v1185 = vsel %vm183, %v1182, 0
    %1187 = vmatpush.xpose.msra.mxu0 0.0
    %1188 = vmatpush.xpose.msra.mxu0 0.0
    %1189 = vmatpush.xpose.msra.mxu0 0.0
    %1190 = vmatpush.xpose.msra.mxu0 0.0
    %1191 = vmatpush.xpose.msra.mxu0 0.0
    %1192 = vmatpush.xpose.msra.mxu0 0.0
    %1193 = vmatpush.xpose.msra.mxu0 0.0
    %1194 = vmatpush.xpose.msra.mxu0 0.0
    %1195 = vmatpush.xpose.msra.mxu0 0.0
    %1196 = vmatpush.xpose.msra.mxu0 0.0
    %1197 = vmatpush.xpose.msra.mxu0 0.0
    %1198 = vmatpush.xpose.msra.mxu0 0.0
    %1199 = vmatpush.xpose.msra.mxu0 0.0
    %1200 = vmatpush.xpose.msra.mxu0 0.0
    %1201 = vmatpush.xpose.msra.mxu0 0.0
    %1202 = vmatpush.xpose.msra.mxu0 %v1185
    %1203 = vmatmul.f32.gmra.mxu0 %v1183
    %v1204 = vpop.f32.mrf.mxu0
    %v1205 = vadd.f32 0.0, %v1204
    %1206 = vdwg.mxu0
    %1207 = vrot.lane.b32.xlu0 %v1072, 96
    %v1208 = vpop.permute.xlu0 %1207
    %v1209 = vsel %vm183, %v1072, 0
    %v1211 = vsel %vm183, %v1208, 0
    %1213 = vmatpush.xpose.msra.mxu0 0.0
    %1214 = vmatpush.xpose.msra.mxu0 0.0
    %1215 = vmatpush.xpose.msra.mxu0 0.0
    %1216 = vmatpush.xpose.msra.mxu0 0.0
    %1217 = vmatpush.xpose.msra.mxu0 0.0
    %1218 = vmatpush.xpose.msra.mxu0 0.0
    %1219 = vmatpush.xpose.msra.mxu0 0.0
    %1220 = vmatpush.xpose.msra.mxu0 0.0
    %1221 = vmatpush.xpose.msra.mxu0 0.0
    %1222 = vmatpush.xpose.msra.mxu0 0.0
    %1223 = vmatpush.xpose.msra.mxu0 0.0
    %1224 = vmatpush.xpose.msra.mxu0 0.0
    %1225 = vmatpush.xpose.msra.mxu0 0.0
    %1226 = vmatpush.xpose.msra.mxu0 0.0
    %1227 = vmatpush.xpose.msra.mxu0 0.0
    %1228 = vmatpush.xpose.msra.mxu0 %v1211
    %1229 = vmatmul.f32.gmra.mxu0 %v1209
    %v1230 = vpop.f32.mrf.mxu0
    %v1231 = vadd.f32 0.0, %v1230
    %1232 = vdwg.mxu0
    %1233 = vrot.lane.b32.xlu0 %v1074, 96
    %v1234 = vpop.permute.xlu0 %1233
    %v1235 = vsel %vm183, %v1074, 0
    %v1237 = vsel %vm183, %v1234, 0
    %1239 = vmatpush.xpose.msra.mxu0 0.0
    %1240 = vmatpush.xpose.msra.mxu0 0.0
    %1241 = vmatpush.xpose.msra.mxu0 0.0
    %1242 = vmatpush.xpose.msra.mxu0 0.0
    %1243 = vmatpush.xpose.msra.mxu0 0.0
    %1244 = vmatpush.xpose.msra.mxu0 0.0
    %1245 = vmatpush.xpose.msra.mxu0 0.0
    %1246 = vmatpush.xpose.msra.mxu0 0.0
    %1247 = vmatpush.xpose.msra.mxu0 0.0
    %1248 = vmatpush.xpose.msra.mxu0 0.0
    %1249 = vmatpush.xpose.msra.mxu0 0.0
    %1250 = vmatpush.xpose.msra.mxu0 0.0
    %1251 = vmatpush.xpose.msra.mxu0 0.0
    %1252 = vmatpush.xpose.msra.mxu0 0.0
    %1253 = vmatpush.xpose.msra.mxu0 0.0
    %1254 = vmatpush.xpose.msra.mxu0 %v1237
    %1255 = vmatmul.f32.gmra.mxu0 %v1235
    %v1256 = vpop.f32.mrf.mxu0
    %v1257 = vadd.f32 0.0, %v1256
    %1258 = vdwg.mxu0
    %1259 = vrot.lane.b32.xlu0 %v1076, 96
    %v1260 = vpop.permute.xlu0 %1259
    %v1261 = vsel %vm183, %v1076, 0
    %v1263 = vsel %vm183, %v1260, 0
    %1265 = vmatpush.xpose.msra.mxu0 0.0
    %1266 = vmatpush.xpose.msra.mxu0 0.0
    %1267 = vmatpush.xpose.msra.mxu0 0.0
    %1268 = vmatpush.xpose.msra.mxu0 0.0
    %1269 = vmatpush.xpose.msra.mxu0 0.0
    %1270 = vmatpush.xpose.msra.mxu0 0.0
    %1271 = vmatpush.xpose.msra.mxu0 0.0
    %1272 = vmatpush.xpose.msra.mxu0 0.0
    %1273 = vmatpush.xpose.msra.mxu0 0.0
    %1274 = vmatpush.xpose.msra.mxu0 0.0
    %1275 = vmatpush.xpose.msra.mxu0 0.0
    %1276 = vmatpush.xpose.msra.mxu0 0.0
    %1277 = vmatpush.xpose.msra.mxu0 0.0
    %1278 = vmatpush.xpose.msra.mxu0 0.0
    %1279 = vmatpush.xpose.msra.mxu0 0.0
    %1280 = vmatpush.xpose.msra.mxu0 %v1263
    %1281 = vmatmul.f32.gmra.mxu0 %v1261
    %v1282 = vpop.f32.mrf.mxu0
    %v1283 = vadd.f32 0.0, %v1282
    %1284 = vdwg.mxu0
    %v1285 = vmul.f32 %v1101, 0.35355338
    %v1286 = vmul.f32 %v1127, 0.35355338
    %v1287 = vmul.f32 %v1153, 0.35355338
    %v1288 = vmul.f32 %v1179, 0.35355338
    %v1289 = vmul.f32 %v1205, 0.35355338
    %v1290 = vmul.f32 %v1231, 0.35355338
    %v1291 = vmul.f32 %v1257, 0.35355338
    %v1292 = vmul.f32 %v1283, 0.35355338
    %v1293 = vadd.f32 %v1285, %v406
    %v1294 = vadd.f32 %v1286, %v407
    %v1295 = vadd.f32 %v1287, %v408
    %v1296 = vadd.f32 %v1288, %v409
    %v1297 = vadd.f32 %v1289, %v410
    %v1298 = vadd.f32 %v1290, %v411
    %v1299 = vadd.f32 %v1291, %v412
    %v1300 = vadd.f32 %v1292, %v413
    %v1301 = vsel %vm183, %v1293, -inf
    %1302 = vmax.xlane.f32.xlu0 %v1301
    %v1303 = vpop.xlane.xlu0 %1302
    %v1304 = vsel %vm183, %v1294, -inf
    %1305 = vmax.xlane.f32.xlu0 %v1304
    %v1306 = vpop.xlane.xlu0 %1305
    %v1307 = vsel %vm183, %v1295, -inf
    %1308 = vmax.xlane.f32.xlu0 %v1307
    %v1309 = vpop.xlane.xlu0 %1308
    %v1310 = vsel %vm183, %v1296, -inf
    %1311 = vmax.xlane.f32.xlu0 %v1310
    %v1312 = vpop.xlane.xlu0 %1311
    %v1313 = vsel %vm183, %v1297, -inf
    %1314 = vmax.xlane.f32.xlu0 %v1313
    %v1315 = vpop.xlane.xlu0 %1314
    %v1316 = vsel %vm183, %v1298, -inf
    %1317 = vmax.xlane.f32.xlu0 %v1316
    %v1318 = vpop.xlane.xlu0 %1317
    %v1319 = vsel %vm183, %v1299, -inf
    %1320 = vmax.xlane.f32.xlu0 %v1319
    %v1321 = vpop.xlane.xlu0 %1320
    %v1322 = vsel %vm183, %v1300, -inf
    %1323 = vmax.xlane.f32.xlu0 %v1322
    %v1324 = vpop.xlane.xlu0 %1323
    %v1325 = vsub.f32 %v1293, %v1303
    %v1326 = vsub.f32 %v1294, %v1306
    %v1327 = vsub.f32 %v1295, %v1309
    %v1328 = vsub.f32 %v1296, %v1312
    %v1329 = vsub.f32 %v1297, %v1315
    %v1330 = vsub.f32 %v1298, %v1318
    %v1331 = vsub.f32 %v1299, %v1321
    %v1332 = vsub.f32 %v1300, %v1324
    %v1333 = vmul.f32 %v1325, 1.442695
    %v1334 = vpow.pop %v1333
    %v1335 = vmul.f32 %v1326, 1.442695
    %v1336 = vpow.pop %v1335
    %v1337 = vmul.f32 %v1327, 1.442695
    %v1338 = vpow.pop %v1337
    %v1339 = vmul.f32 %v1328, 1.442695
    %v1340 = vpow.pop %v1339
    %v1341 = vmul.f32 %v1329, 1.442695
    %v1342 = vpow.pop %v1341
    %v1343 = vmul.f32 %v1330, 1.442695
    %v1344 = vpow.pop %v1343
    %v1345 = vmul.f32 %v1331, 1.442695
    %v1346 = vpow.pop %v1345
    %v1347 = vmul.f32 %v1332, 1.442695
    %v1348 = vpow.pop %v1347
    %v1349 = vsel %vm183, %v1334, 0.0
    %1350 = vadd.xlane.f32.xlu0 %v1349
    %v1351 = vpop.xlane.xlu0 %1350
    %v1352 = vsel %vm183, %v1336, 0.0
    %1353 = vadd.xlane.f32.xlu0 %v1352
    %v1354 = vpop.xlane.xlu0 %1353
    %v1355 = vsel %vm183, %v1338, 0.0
    %1356 = vadd.xlane.f32.xlu0 %v1355
    %v1357 = vpop.xlane.xlu0 %1356
    %v1358 = vsel %vm183, %v1340, 0.0
    %1359 = vadd.xlane.f32.xlu0 %v1358
    %v1360 = vpop.xlane.xlu0 %1359
    %v1361 = vsel %vm183, %v1342, 0.0
    %1362 = vadd.xlane.f32.xlu0 %v1361
    %v1363 = vpop.xlane.xlu0 %1362
    %v1364 = vsel %vm183, %v1344, 0.0
    %1365 = vadd.xlane.f32.xlu0 %v1364
    %v1366 = vpop.xlane.xlu0 %1365
    %v1367 = vsel %vm183, %v1346, 0.0
    %1368 = vadd.xlane.f32.xlu0 %v1367
    %v1369 = vpop.xlane.xlu0 %1368
    %v1370 = vsel %vm183, %v1348, 0.0
    %1371 = vadd.xlane.f32.xlu0 %v1370
    %v1372 = vpop.xlane.xlu0 %1371
    %v1373 = vrcp.pop %v1351
    %v1374 = vrcp.pop %v1354
    %v1375 = vrcp.pop %v1357
    %v1376 = vrcp.pop %v1360
    %v1377 = vrcp.pop %v1363
    %v1378 = vrcp.pop %v1366
    %v1379 = vrcp.pop %v1369
    %v1380 = vrcp.pop %v1372
    %v1381 = vmul.f32 %v1334, %v1373
    %v1382 = vmul.f32 %v1336, %v1374
    %v1383 = vmul.f32 %v1338, %v1375
    %v1384 = vmul.f32 %v1340, %v1376
    %v1385 = vmul.f32 %v1342, %v1377
    %v1386 = vmul.f32 %v1344, %v1378
    %v1387 = vmul.f32 %v1346, %v1379
    %v1388 = vmul.f32 %v1348, %v1380
    %1389 = vrot.lane.b32.xlu0 %v1059, 64
    %v1390 = vpop.permute.xlu0 %1389
    %v1393 = vsel %vm183, %v1381, 0
    %1395 = vmatpush.msra.mxu0 0.0
    %1396 = vmatpush.msra.mxu0 0.0
    %1397 = vmatpush.msra.mxu0 0.0
    %1398 = vmatpush.msra.mxu0 0.0
    %1399 = vmatpush.msra.mxu0 0.0
    %1400 = vmatpush.msra.mxu0 0.0
    %1401 = vmatpush.msra.mxu0 0.0
    %1402 = vmatpush.msra.mxu0 0.0
    %1403 = vmatpush.msra.mxu0 0.0
    %1404 = vmatpush.msra.mxu0 0.0
    %1405 = vmatpush.msra.mxu0 0.0
    %1406 = vmatpush.msra.mxu0 0.0
    %1407 = vmatpush.msra.mxu0 0.0
    %1408 = vmatpush.msra.mxu0 0.0
    %1409 = vmatpush.msra.mxu0 0.0
    %1410 = vmatpush.msra.mxu0 %v1390
    %1411 = vmatmul.f32.gmra.mxu0 %v1393
    %v1412 = vpop.f32.mrf.mxu0
    %v1413 = vadd.f32 0.0, %v1412
    %1414 = vdwg.mxu0
    %1415 = vrot.lane.b32.xlu0 %v1065, 64
    %v1416 = vpop.permute.xlu0 %1415
    %v1419 = vsel %vm183, %v1382, 0
    %1421 = vmatpush.msra.mxu0 0.0
    %1422 = vmatpush.msra.mxu0 0.0
    %1423 = vmatpush.msra.mxu0 0.0
    %1424 = vmatpush.msra.mxu0 0.0
    %1425 = vmatpush.msra.mxu0 0.0
    %1426 = vmatpush.msra.mxu0 0.0
    %1427 = vmatpush.msra.mxu0 0.0
    %1428 = vmatpush.msra.mxu0 0.0
    %1429 = vmatpush.msra.mxu0 0.0
    %1430 = vmatpush.msra.mxu0 0.0
    %1431 = vmatpush.msra.mxu0 0.0
    %1432 = vmatpush.msra.mxu0 0.0
    %1433 = vmatpush.msra.mxu0 0.0
    %1434 = vmatpush.msra.mxu0 0.0
    %1435 = vmatpush.msra.mxu0 0.0
    %1436 = vmatpush.msra.mxu0 %v1416
    %1437 = vmatmul.f32.gmra.mxu0 %v1419
    %v1438 = vpop.f32.mrf.mxu0
    %v1439 = vadd.f32 0.0, %v1438
    %1440 = vdwg.mxu0
    %1441 = vrot.lane.b32.xlu0 %v1067, 64
    %v1442 = vpop.permute.xlu0 %1441
    %v1445 = vsel %vm183, %v1383, 0
    %1447 = vmatpush.msra.mxu0 0.0
    %1448 = vmatpush.msra.mxu0 0.0
    %1449 = vmatpush.msra.mxu0 0.0
    %1450 = vmatpush.msra.mxu0 0.0
    %1451 = vmatpush.msra.mxu0 0.0
    %1452 = vmatpush.msra.mxu0 0.0
    %1453 = vmatpush.msra.mxu0 0.0
    %1454 = vmatpush.msra.mxu0 0.0
    %1455 = vmatpush.msra.mxu0 0.0
    %1456 = vmatpush.msra.mxu0 0.0
    %1457 = vmatpush.msra.mxu0 0.0
    %1458 = vmatpush.msra.mxu0 0.0
    %1459 = vmatpush.msra.mxu0 0.0
    %1460 = vmatpush.msra.mxu0 0.0
    %1461 = vmatpush.msra.mxu0 0.0
    %1462 = vmatpush.msra.mxu0 %v1442
    %1463 = vmatmul.f32.gmra.mxu0 %v1445
    %v1464 = vpop.f32.mrf.mxu0
    %v1465 = vadd.f32 0.0, %v1464
    %1466 = vdwg.mxu0
    %1467 = vrot.lane.b32.xlu0 %v1069, 64
    %v1468 = vpop.permute.xlu0 %1467
    %v1471 = vsel %vm183, %v1384, 0
    %1473 = vmatpush.msra.mxu0 0.0
    %1474 = vmatpush.msra.mxu0 0.0
    %1475 = vmatpush.msra.mxu0 0.0
    %1476 = vmatpush.msra.mxu0 0.0
    %1477 = vmatpush.msra.mxu0 0.0
    %1478 = vmatpush.msra.mxu0 0.0
    %1479 = vmatpush.msra.mxu0 0.0
    %1480 = vmatpush.msra.mxu0 0.0
    %1481 = vmatpush.msra.mxu0 0.0
    %1482 = vmatpush.msra.mxu0 0.0
    %1483 = vmatpush.msra.mxu0 0.0
    %1484 = vmatpush.msra.mxu0 0.0
    %1485 = vmatpush.msra.mxu0 0.0
    %1486 = vmatpush.msra.mxu0 0.0
    %1487 = vmatpush.msra.mxu0 0.0
    %1488 = vmatpush.msra.mxu0 %v1468
    %1489 = vmatmul.f32.gmra.mxu0 %v1471
    %v1490 = vpop.f32.mrf.mxu0
    %v1491 = vadd.f32 0.0, %v1490
    %1492 = vdwg.mxu0
    %1493 = vrot.lane.b32.xlu0 %v1061, 64
    %v1494 = vpop.permute.xlu0 %1493
    %v1497 = vsel %vm183, %v1385, 0
    %1499 = vmatpush.msra.mxu0 0.0
    %1500 = vmatpush.msra.mxu0 0.0
    %1501 = vmatpush.msra.mxu0 0.0
    %1502 = vmatpush.msra.mxu0 0.0
    %1503 = vmatpush.msra.mxu0 0.0
    %1504 = vmatpush.msra.mxu0 0.0
    %1505 = vmatpush.msra.mxu0 0.0
    %1506 = vmatpush.msra.mxu0 0.0
    %1507 = vmatpush.msra.mxu0 0.0
    %1508 = vmatpush.msra.mxu0 0.0
    %1509 = vmatpush.msra.mxu0 0.0
    %1510 = vmatpush.msra.mxu0 0.0
    %1511 = vmatpush.msra.mxu0 0.0
    %1512 = vmatpush.msra.mxu0 0.0
    %1513 = vmatpush.msra.mxu0 0.0
    %1514 = vmatpush.msra.mxu0 %v1494
    %1515 = vmatmul.f32.gmra.mxu0 %v1497
    %v1516 = vpop.f32.mrf.mxu0
    %v1517 = vadd.f32 0.0, %v1516
    %1518 = vdwg.mxu0
    %1519 = vrot.lane.b32.xlu0 %v1072, 64
    %v1520 = vpop.permute.xlu0 %1519
    %v1523 = vsel %vm183, %v1386, 0
    %1525 = vmatpush.msra.mxu0 0.0
    %1526 = vmatpush.msra.mxu0 0.0
    %1527 = vmatpush.msra.mxu0 0.0
    %1528 = vmatpush.msra.mxu0 0.0
    %1529 = vmatpush.msra.mxu0 0.0
    %1530 = vmatpush.msra.mxu0 0.0
    %1531 = vmatpush.msra.mxu0 0.0
    %1532 = vmatpush.msra.mxu0 0.0
    %1533 = vmatpush.msra.mxu0 0.0
    %1534 = vmatpush.msra.mxu0 0.0
    %1535 = vmatpush.msra.mxu0 0.0
    %1536 = vmatpush.msra.mxu0 0.0
    %1537 = vmatpush.msra.mxu0 0.0
    %1538 = vmatpush.msra.mxu0 0.0
    %1539 = vmatpush.msra.mxu0 0.0
    %1540 = vmatpush.msra.mxu0 %v1520
    %1541 = vmatmul.f32.gmra.mxu0 %v1523
    %v1542 = vpop.f32.mrf.mxu0
    %v1543 = vadd.f32 0.0, %v1542
    %1544 = vdwg.mxu0
    %1545 = vrot.lane.b32.xlu0 %v1074, 64
    %v1546 = vpop.permute.xlu0 %1545
    %v1549 = vsel %vm183, %v1387, 0
    %1551 = vmatpush.msra.mxu0 0.0
    %1552 = vmatpush.msra.mxu0 0.0
    %1553 = vmatpush.msra.mxu0 0.0
    %1554 = vmatpush.msra.mxu0 0.0
    %1555 = vmatpush.msra.mxu0 0.0
    %1556 = vmatpush.msra.mxu0 0.0
    %1557 = vmatpush.msra.mxu0 0.0
    %1558 = vmatpush.msra.mxu0 0.0
    %1559 = vmatpush.msra.mxu0 0.0
    %1560 = vmatpush.msra.mxu0 0.0
    %1561 = vmatpush.msra.mxu0 0.0
    %1562 = vmatpush.msra.mxu0 0.0
    %1563 = vmatpush.msra.mxu0 0.0
    %1564 = vmatpush.msra.mxu0 0.0
    %1565 = vmatpush.msra.mxu0 0.0
    %1566 = vmatpush.msra.mxu0 %v1546
    %1567 = vmatmul.f32.gmra.mxu0 %v1549
    %v1568 = vpop.f32.mrf.mxu0
    %v1569 = vadd.f32 0.0, %v1568
    %1570 = vdwg.mxu0
    %1571 = vrot.lane.b32.xlu0 %v1076, 64
    %v1572 = vpop.permute.xlu0 %1571
    %v1575 = vsel %vm183, %v1388, 0
    %1577 = vmatpush.msra.mxu0 0.0
    %1578 = vmatpush.msra.mxu0 0.0
    %1579 = vmatpush.msra.mxu0 0.0
    %1580 = vmatpush.msra.mxu0 0.0
    %1581 = vmatpush.msra.mxu0 0.0
    %1582 = vmatpush.msra.mxu0 0.0
    %1583 = vmatpush.msra.mxu0 0.0
    %1584 = vmatpush.msra.mxu0 0.0
    %1585 = vmatpush.msra.mxu0 0.0
    %1586 = vmatpush.msra.mxu0 0.0
    %1587 = vmatpush.msra.mxu0 0.0
    %1588 = vmatpush.msra.mxu0 0.0
    %1589 = vmatpush.msra.mxu0 0.0
    %1590 = vmatpush.msra.mxu0 0.0
    %1591 = vmatpush.msra.mxu0 0.0
    %1592 = vmatpush.msra.mxu0 %v1572
    %1593 = vmatmul.f32.gmra.mxu0 %v1575
    %v1594 = vpop.f32.mrf.mxu0
    %v1595 = vadd.f32 0.0, %v1594
    %1596 = vdwg.mxu0
    %1598 = vrot.lane.b32.xlu0 %v1439, 8
    %v1599 = vpop.permute.xlu0 %1598
    %1602 = vrot.lane.b32.xlu0 %v1465, 16
    %v1603 = vpop.permute.xlu0 %1602
    %1606 = vrot.lane.b32.xlu0 %v1491, 24
    %v1607 = vpop.permute.xlu0 %1606
    %v1609 = vsel %vm183, %v1413, %v1599
    %v1610 = vsel %vm739, %v1609, %v1603
    %v1611 = vsel %vm741, %v1610, %v1607
    %1613 = vrot.lane.b32.xlu0 %v1543, 8
    %v1614 = vpop.permute.xlu0 %1613
    %1617 = vrot.lane.b32.xlu0 %v1569, 16
    %v1618 = vpop.permute.xlu0 %1617
    %1621 = vrot.lane.b32.xlu0 %v1595, 24
    %v1622 = vpop.permute.xlu0 %1621
    %v1624 = vsel %vm183, %v1517, %v1614
    %v1625 = vsel %vm739, %v1624, %v1618
    %v1626 = vsel %vm741, %v1625, %v1622
    %v1627 = vpack.c.bf16 %v1626, %v1611
    %s1628 = scalar_lea.vmem %s6, 16
    %v1629 = vld [vmem:[%s1628] sm:$0xf]
    %v1630 = vld [vmem:[%s1628 + $0x4] sm:$0xf]
    %v1631 = vld [vmem:[%s1628 + $0x8] sm:$0xf]
    %v1632 = vld [vmem:[%s1628 + $0xc] sm:$0xf]
    %s1633 = scalar_lea.vmem %s7, 1
    %v1634 = vld [vmem:[%s1633] sm:$0x1]
    %v1636 = vperm.slane %v1634, 0
    %v1642 = vunpack.c.l.b16 %v1629
    %v1643 = vunpack.c.l.b16 %v1630
    %v1644 = vunpack.c.l.b16 %v1631
    %v1645 = vunpack.c.l.b16 %v1632
    %v1646 = vpack.c.b16 %v1643, %v1642
    %v1647 = vpack.c.b16 %v1645, %v1644
    %v1651 = vsel %vm59, %v1627, 0
    %1653 = vmatpush.bf16.msra.mxu0 0
    %1654 = vmatpush.bf16.msra.mxu0 0
    %1655 = vmatpush.bf16.msra.mxu0 0
    %1656 = vmatpush.bf16.msra.mxu0 0
    %1657 = vmatpush.bf16.msra.mxu0 0
    %1658 = vmatpush.bf16.msra.mxu0 0
    %1659 = vmatpush.bf16.msra.mxu0 %v1647
    %1660 = vmatpush.bf16.msra.mxu0 %v1646
    %1661 = vmatmul.bf16.gmra.mxu0 %v1651
    %v1662 = vpop.f32.mrf.mxu0
    %v1663 = vadd.f32 %v1636, %v1662
    %v1664 = vpop.f32.mrf.mxu0
    %v1665 = vadd.f32 %v1636, %v1664
    %1666 = vdwg.mxu0
    %v1667 = vadd.f32 %v1021, %v1663
    %v1668 = vadd.f32 %v1022, %v1665
    %s1669 = scalar_lea.vmem %s8, 1
    %v1670 = vld [vmem:[%s1669] sm:$0x1]
    %s1671 = scalar_lea.vmem %s9, 1
    %v1672 = vld [vmem:[%s1671] sm:$0x1]
    %v1673 = vsel %vm59, %v1667, 0.0
    %1674 = vadd.xlane.f32.xlu0 %v1673
    %v1675 = vpop.xlane.xlu0 %1674
    %v1676 = vsel %vm59, %v1668, 0.0
    %1677 = vadd.xlane.f32.xlu0 %v1676
    %v1678 = vpop.xlane.xlu0 %1677
    %v1679 = vmul.f32 %v1675, %v72
    %v1680 = vmul.f32 %v1678, %v72
    %v1681 = vsub.f32 %v1667, %v1679
    %v1682 = vsub.f32 %v1668, %v1680
    %v1683 = vmul.f32 %v1681, %v1681
    %v1684 = vmul.f32 %v1682, %v1682
    %v1685 = vsel %vm59, %v1683, 0.0
    %1686 = vadd.xlane.f32.xlu0 %v1685
    %v1687 = vpop.xlane.xlu0 %1686
    %v1688 = vsel %vm59, %v1684, 0.0
    %1689 = vadd.xlane.f32.xlu0 %v1688
    %v1690 = vpop.xlane.xlu0 %1689
    %v1691 = vmul.f32 %v1687, %v72
    %v1692 = vmul.f32 %v1690, %v72
    %v1693 = vadd.f32 %v1691, 1e-12
    %v1694 = vadd.f32 %v1692, 1e-12
    %v1695 = vrsqrt.pop %v1693
    %v1696 = vmul.f32 %v1695, %v1693
    %v1697 = vmul.f32 %v1696, %v1695
    %v1698 = vmul.f32 0.5, %v1697
    %v1699 = vsub.f32 1.5, %v1698
    %v1700 = vmul.f32 %v1695, %v1699
    %vm1701 = vweird.f32 %v1693
    %vm1702 = vweird.f32 %v1695
    %vm1703 = vmor %vm1701, %vm1702
    %v1704 = vsel %vm1703, %v1695, %v1700
    %v1705 = vrsqrt.pop %v1694
    %v1706 = vmul.f32 %v1705, %v1694
    %v1707 = vmul.f32 %v1706, %v1705
    %v1708 = vmul.f32 0.5, %v1707
    %v1709 = vsub.f32 1.5, %v1708
    %v1710 = vmul.f32 %v1705, %v1709
    %vm1711 = vweird.f32 %v1694
    %vm1712 = vweird.f32 %v1705
    %vm1713 = vmor %vm1711, %vm1712
    %v1714 = vsel %vm1713, %v1705, %v1710
    %v1715 = vmul.f32 %v1681, %v1704
    %v1716 = vmul.f32 %v1682, %v1714
    %v1718 = vperm.slane %v1670, 0
    %v1720 = vmul.f32 %v1715, %v1718
    %v1721 = vmul.f32 %v1716, %v1718
    %v1723 = vperm.slane %v1672, 0
    %v1725 = vadd.f32 %v1720, %v1723
    %v1726 = vadd.f32 %v1721, %v1723
    %v1727 = vpack.c.bf16 %v1726, %v1725
    %s1728 = scalar_lea.vmem %s10, 16
    %v1729 = vld [vmem:[%s1728] sm:$0xf]
    %v1730 = vld [vmem:[%s1728 + $0x4] sm:$0xf]
    %v1731 = vld [vmem:[%s1728 + $0x8] sm:$0xf]
    %v1732 = vld [vmem:[%s1728 + $0xc] sm:$0xf]
    %s1733 = scalar_lea.vmem %s11, 1
    %v1734 = vld [vmem:[%s1733] sm:$0x1]
    %v1736 = vperm.slane %v1734, 0
    %v1742 = vunpack.c.l.b16 %v1729
    %v1743 = vunpack.c.l.b16 %v1730
    %v1744 = vunpack.c.l.b16 %v1731
    %v1745 = vunpack.c.l.b16 %v1732
    %v1746 = vpack.c.b16 %v1743, %v1742
    %v1747 = vpack.c.b16 %v1745, %v1744
    %v1751 = vsel %vm59, %v1727, 0
    %1753 = vmatpush.bf16.msra.mxu0 0
    %1754 = vmatpush.bf16.msra.mxu0 0
    %1755 = vmatpush.bf16.msra.mxu0 0
    %1756 = vmatpush.bf16.msra.mxu0 0
    %1757 = vmatpush.bf16.msra.mxu0 0
    %1758 = vmatpush.bf16.msra.mxu0 0
    %1759 = vmatpush.bf16.msra.mxu0 %v1747
    %1760 = vmatpush.bf16.msra.mxu0 %v1746
    %1761 = vmatmul.bf16.gmra.mxu0 %v1751
    %v1762 = vpop.f32.mrf.mxu0
    %v1763 = vadd.f32 %v1736, %v1762
    %v1764 = vpop.f32.mrf.mxu0
    %v1765 = vadd.f32 %v1736, %v1764
    %1766 = vdwg.mxu0
    %v1767 = vmul.f32 %v1763, %v1763
    %v1768 = vmul.f32 %v1765, %v1765
    %v1769 = vmul.f32 %v1763, %v1767
    %v1770 = vmul.f32 %v1765, %v1768
    %v1771 = vmul.f32 %v1769, 0.044715
    %v1772 = vmul.f32 %v1770, 0.044715
    %v1773 = vadd.f32 %v1763, %v1771
    %v1774 = vadd.f32 %v1765, %v1772
    %v1775 = vmul.f32 %v1773, 0.7978846
    %v1776 = vmul.f32 %v1774, 0.7978846
    %v1777 = vtanh.pop %v1775
    %v1778 = vtanh.pop %v1776
    %v1779 = vadd.f32 %v1777, 1.0
    %v1780 = vadd.f32 %v1778, 1.0
    %v1781 = vmul.f32 %v1779, 0.5
    %v1782 = vmul.f32 %v1780, 0.5
    %v1783 = vmul.f32 %v1763, %v1781
    %v1784 = vmul.f32 %v1765, %v1782
    %v1785 = vpack.c.bf16 %v1784, %v1783
    %s1786 = scalar_lea.vmem %s12, 32
    %v1787 = vld [vmem:[%s1786] sm:$0xf]
    %v1788 = vld [vmem:[%s1786 + $0x4] sm:$0xf]
    %v1789 = vld [vmem:[%s1786 + $0x8] sm:$0xf]
    %v1790 = vld [vmem:[%s1786 + $0xc] sm:$0xf]
    %v1791 = vld [vmem:[%s1786 + $0x10] sm:$0xf]
    %v1792 = vld [vmem:[%s1786 + $0x14] sm:$0xf]
    %v1793 = vld [vmem:[%s1786 + $0x18] sm:$0xf]
    %v1794 = vld [vmem:[%s1786 + $0x1c] sm:$0xf]
    %s1795 = scalar_lea.vmem %s13, 1
    %v1796 = vld [vmem:[%s1795] sm:$0x1]
    %v1798 = vperm.slane %v1796, 0
    %v1808 = vunpack.c.l.b16 %v1787
    %v1809 = vunpack.c.l.b16 %v1788
    %v1810 = vunpack.c.l.b16 %v1789
    %v1811 = vunpack.c.l.b16 %v1790
    %v1812 = vunpack.c.l.b16 %v1791
    %v1813 = vunpack.c.l.b16 %v1792
    %v1814 = vunpack.c.l.b16 %v1793
    %v1815 = vunpack.c.l.b16 %v1794
    %v1816 = vpack.c.b16 %v1809, %v1808
    %v1817 = vpack.c.b16 %v1811, %v1810
    %v1818 = vpack.c.b16 %v1813, %v1812
    %v1819 = vpack.c.b16 %v1815, %v1814
    %v1825 = vsel %vm947, %v1785, 0
    %1827 = vmatpush.bf16.msra.mxu0 0
    %1828 = vmatpush.bf16.msra.mxu0 0
    %1829 = vmatpush.bf16.msra.mxu0 0
    %1830 = vmatpush.bf16.msra.mxu0 0
    %1831 = vmatpush.bf16.msra.mxu0 %v1819
    %1832 = vmatpush.bf16.msra.mxu0 %v1818
    %1833 = vmatpush.bf16.msra.mxu0 %v1817
    %1834 = vmatpush.bf16.msra.mxu0 %v1816
    %1835 = vmatmul.bf16.gmra.mxu0 %v1825
    %v1836 = vpop.f32.mrf.mxu0
    %v1837 = vadd.f32 %v1798, %v1836
    %v1838 = vpop.f32.mrf.mxu0
    %v1839 = vadd.f32 %v1798, %v1838
    %1840 = vdwg.mxu0
    %v1841 = vadd.f32 %v1725, %v1837
    %v1842 = vadd.f32 %v1726, %v1839
    %s1843 = scalar_lea.vmem %s14, 1
    %v1844 = vld [vmem:[%s1843] sm:$0x1]
    %s1845 = scalar_lea.vmem %s15, 1
    %v1846 = vld [vmem:[%s1845] sm:$0x1]
    %v1847 = vsel %vm59, %v1841, 0.0
    %1848 = vadd.xlane.f32.xlu0 %v1847
    %v1849 = vpop.xlane.xlu0 %1848
    %v1850 = vsel %vm59, %v1842, 0.0
    %1851 = vadd.xlane.f32.xlu0 %v1850
    %v1852 = vpop.xlane.xlu0 %1851
    %v1853 = vmul.f32 %v1849, %v72
    %v1854 = vmul.f32 %v1852, %v72
    %v1855 = vsub.f32 %v1841, %v1853
    %v1856 = vsub.f32 %v1842, %v1854
    %v1857 = vmul.f32 %v1855, %v1855
    %v1858 = vmul.f32 %v1856, %v1856
    %v1859 = vsel %vm59, %v1857, 0.0
    %1860 = vadd.xlane.f32.xlu0 %v1859
    %v1861 = vpop.xlane.xlu0 %1860
    %v1862 = vsel %vm59, %v1858, 0.0
    %1863 = vadd.xlane.f32.xlu0 %v1862
    %v1864 = vpop.xlane.xlu0 %1863
    %v1865 = vmul.f32 %v1861, %v72
    %v1866 = vmul.f32 %v1864, %v72
    %v1867 = vadd.f32 %v1865, 1e-12
    %v1868 = vadd.f32 %v1866, 1e-12
    %v1869 = vrsqrt.pop %v1867
    %v1870 = vmul.f32 %v1869, %v1867
    %v1871 = vmul.f32 %v1870, %v1869
    %v1872 = vmul.f32 0.5, %v1871
    %v1873 = vsub.f32 1.5, %v1872
    %v1874 = vmul.f32 %v1869, %v1873
    %vm1875 = vweird.f32 %v1867
    %vm1876 = vweird.f32 %v1869
    %vm1877 = vmor %vm1875, %vm1876
    %v1878 = vsel %vm1877, %v1869, %v1874
    %v1879 = vrsqrt.pop %v1868
    %v1880 = vmul.f32 %v1879, %v1868
    %v1881 = vmul.f32 %v1880, %v1879
    %v1882 = vmul.f32 0.5, %v1881
    %v1883 = vsub.f32 1.5, %v1882
    %v1884 = vmul.f32 %v1879, %v1883
    %vm1885 = vweird.f32 %v1868
    %vm1886 = vweird.f32 %v1879
    %vm1887 = vmor %vm1885, %vm1886
    %v1888 = vsel %vm1887, %v1879, %v1884
    %v1889 = vmul.f32 %v1855, %v1878
    %v1890 = vmul.f32 %v1856, %v1888
    %v1892 = vperm.slane %v1844, 0
    %v1894 = vmul.f32 %v1889, %v1892
    %v1895 = vmul.f32 %v1890, %v1892
    %v1897 = vperm.slane %v1846, 0
    %v1899 = vadd.f32 %v1894, %v1897
    %v1900 = vadd.f32 %v1895, %v1897
    %v1902 = vrot.slane %v1900, 7
    %vm1904 = vcmask 1040384
    %v1905 = vsel %vm1904, %v1899, %v1902
    %vm1906 = vcmask 254976
    %1907 = vst.msk [vmem:[#allocation2] sm:$0x3] %vm1906, %v1905
    // Predicated region
    $region66: #{bert_dot_dualfusion_forward.1} parent=1 // pred_check
      _
    $region67: #{bert_dot_dualfusion_forward.1} parent=1 // pred_check_branch
      %1909 = sbr.rel (0) target = $region69
    $region68: #{bert_dot_dualfusion_forward.1} parent=1 // pred_region
      %1911 = vsyncadd [#allocation3], 0
      %s1913 = sshll.u32 [#allocation2], 4
      %s1914 = int_to_ptr.vmem [resolvable:$true] %s1913
      %s1915 = sshll.u32 %s16, 4
      %s1916 = int_to_ptr.hbm [resolvable:$true] %s1915
      %1918 = dma.vmem_to_hbm [thread:$0]  %s1914, 32, %s1916, [#allocation3]
    $region69: #{bert_dot_dualfusion_forward.1} parent=1 // pred_fallthru
      _
    // Predicated region
    $region70: #{bert_dot_dualfusion_forward.1} parent=1 // pred_check
      _
    $region71: #{bert_dot_dualfusion_forward.1} parent=1 // pred_check_branch
      %1920 = sbr.rel (0) target = $region73
    $region72: #{bert_dot_dualfusion_forward.1} parent=1 // pred_region
      %1922 = dma.done [#allocation3], 32
    $region73: #{bert_dot_dualfusion_forward.1} parent=1 // pred_fallthru
      _
    %1923 = vsyncpa [#allocation3], 1

</llo_original>
